<compile_context>
chip_gen: v7x
topology: tpu7x:2x2x1
jax: 0.10.0
libtpu: 0.0.40
codegen_flags: <defaults>
</compile_context>

<pallas_src>
import functools
import math

import jax
import jax.numpy as jnp
from jax.experimental import pallas as pl
from jax.experimental.pallas import tpu as pltpu


def _round_up(a, b):
    return (a + b - 1) // b * b


# --------------------------------------------------------------------------- #
# Stage 1: fused per-head Q|K|V projection.                                    #
# --------------------------------------------------------------------------- #
def _qkv_proj_kernel(x_ref, w_ref, b_ref, q_ref, k_ref, v_ref, *, d_head):
    # x_ref: (1, block_l, D); w_ref: (1, D, 3*dh); b_ref: (1, 1, 3*dh)
    y = jnp.dot(x_ref[0], w_ref[0], preferred_element_type=jnp.float32) + b_ref[0]
    q_ref[0, 0] = y[:, :d_head].astype(q_ref.dtype)            # scale pre-folded in Wq
    k_ref[0, 0] = y[:, d_head:2 * d_head].astype(k_ref.dtype)
    v_ref[0, 0] = y[:, 2 * d_head:].astype(v_ref.dtype)


# --------------------------------------------------------------------------- #
# Stage 2: flash attention + output projection.                                #
# --------------------------------------------------------------------------- #
def _flash_attn_kernel(q_ref, k_ref, v_ref, wo_ref, bo_ref, o_ref,
                       m_scr, l_scr, acc_scr, out_scr,
                       *, seq_len, block_kv, p_dtype, approx_recip, mask_kv):
    h = pl.program_id(2)
    ki = pl.program_id(3)
    nh = pl.num_programs(2)
    nk = pl.num_programs(3)

    @pl.when(jnp.logical_and(h == 0, ki == 0))
    def _init_out():
        out_scr[...] = jnp.zeros_like(out_scr)

    @pl.when(ki == 0)
    def _init_head():
        m_scr[...] = jnp.full_like(m_scr, -jnp.inf)
        l_scr[...] = jnp.zeros_like(l_scr)
        acc_scr[...] = jnp.zeros_like(acc_scr)

    q = q_ref[0, 0]                              # (block_q, dh), 1/sqrt(dh) pre-folded
    k = k_ref[0, 0]                              # (block_kv, dh)
    v = v_ref[0, 0]                              # (block_kv, dh)

    # s[i, j] = <q_i, k_j>: contract the last dims directly (no explicit transpose).
    s = jax.lax.dot_general(q, k, (((1,), (1,)), ((), ())),
                            preferred_element_type=jnp.float32)  # (block_q, block_kv)
    if mask_kv:  # static: only emitted when L was padded
        col = ki * block_kv + jax.lax.broadcasted_iota(jnp.int32, s.shape, 1)
        s = jnp.where(col < seq_len, s, -jnp.inf)

    # Online-softmax update: max/exp/sum in f32 (portable incl. v5e); probabilities
    # are stored/streamed in p_dtype (bf16 on the bf16 path) for the sum + PV matmul.
    m_prev = m_scr[...]
    m_new = jnp.maximum(m_prev, jnp.max(s, axis=-1, keepdims=True))
    alpha = jnp.exp(m_prev - m_new)
    p = jnp.exp(s - m_new).astype(p_dtype)
    l_scr[...] = alpha * l_scr[...] + jnp.sum(p, axis=-1, keepdims=True,
                                              dtype=jnp.float32)
    acc_scr[...] = alpha * acc_scr[...] + jnp.dot(p, v,
                                                  preferred_element_type=jnp.float32)
    m_scr[...] = m_new

    @pl.when(ki == nk - 1)
    def _finish_head():
        # Normalize once on the (block_q, dh) accumulator (EUP reciprocal), then fold
        # this head into the output projection (no concat / relayout needed).
        attn_h = acc_scr[...] * pl.reciprocal(l_scr[...], approx=approx_recip)
        w_o = wo_ref[0] if wo_ref.shape[0] == 1 else wo_ref[h]  # per-head or resident
        out_scr[...] += jnp.dot(attn_h.astype(w_o.dtype), w_o,
                                preferred_element_type=jnp.float32)

    @pl.when(jnp.logical_and(h == nh - 1, ki == nk - 1))
    def _write_out():
        o_ref[0] = (out_scr[...] + bo_ref[...]).astype(o_ref.dtype)

    # TODO(synk): top_k sparse re-normalization path (module default top_k=None) not implemented.


def _default_vmem_limit_bytes():
    # Per-generation VMEM budget: ~55% of physical VMEM per TensorCore
    # (~70 MiB on v5e/v6e's 128 MiB, ~35 MiB on v7x's 64 MiB), capped at 96 MiB.
    try:
        cap = pltpu.get_tpu_info().vmem_capacity_bytes
    except Exception:
        cap = 64 * 1024 * 1024
    return int(min(cap * 0.55, 96 * 1024 * 1024))


@functools.partial(jax.jit,
                   static_argnames=("num_heads", "top_k", "block_q", "block_kv",
                                    "compute_dtype", "vmem_limit_bytes", "kv_buffers"))
def em_attention_block(x, params, *, num_heads, top_k=None, block_q=256, block_kv=256,
                       compute_dtype=jnp.bfloat16, vmem_limit_bytes=None,
                       kv_buffers=None):
    """Multi-head self-attention matching EMAttentionBlock.forward (top_k=None).

    x: (B, L, D) float32.  params: wq/wk/wv/wo stored as (D_in, D_out) (already
    transposed vs torch) and bq/bk/bv/bo as (1, D), so y = x @ W + b.
    """
    if top_k is not None:
        # TODO(synk): top_k sparse re-normalization path not implemented.
        raise NotImplementedError("top_k sparsification is not supported")

    B, L, D = x.shape
    assert D % num_heads == 0, "d_model must be divisible by num_heads"
    dh = D // num_heads
    scale = 1.0 / math.sqrt(dh)
    # NOTE: for production shapes d_head should be a multiple of 128 so per-head
    # tiles are lane-aligned; the kernel remains correct (just slower) otherwise.

    if vmem_limit_bytes is None:
        vmem_limit_bytes = _default_vmem_limit_bytes()

    # ---- block sizes & padding (no silent "untiled" fallback) ----
    block_q = min(_round_up(block_q, 8), _round_up(L, 8))
    block_kv = min(_round_up(block_kv, 8), _round_up(L, 8))
    L_pad = _round_up(L, math.lcm(block_q, block_kv))
    nq = L_pad // block_q
    nk = L_pad // block_kv
    mask_kv = (L_pad != L)

    x_p = jnp.pad(x, ((0, 0), (0, L_pad - L), (0, 0))) if L_pad != L else x
    x_c = x_p.astype(compute_dtype)

    # ---- wrapper-side layout plumbing (plain XLA, done once) ----
    def heads_to_leading(w):                      # (D, H*dh) -> (H, D, dh)
        return w.reshape(D, num_heads, dh).transpose(1, 0, 2)

    wq_h = heads_to_leading(params["wq"] * scale)                      # scale folded
    wk_h = heads_to_leading(params["wk"])
    wv_h = heads_to_leading(params["wv"])
    w_qkv = jnp.concatenate([wq_h, wk_h, wv_h], axis=-1).astype(compute_dtype)  # (H,D,3dh)

    bq_h = (params["bq"] * scale).reshape(num_heads, 1, dh)
    bk_h = params["bk"].reshape(num_heads, 1, dh)
    bv_h = params["bv"].reshape(num_heads, 1, dh)
    b_qkv = jnp.concatenate([bq_h, bk_h, bv_h], axis=-1).astype(jnp.float32)    # (H,1,3dh)

    wo_h = params["wo"].reshape(num_heads, dh, D).astype(compute_dtype)         # (H,dh,D)
    bo = params["bo"].astype(jnp.float32)                                       # (1, D)

    # ------------------------------------------------------------------ #
    # Stage 1: Q/K/V projection (x and each weight slab read once).      #
    # ------------------------------------------------------------------ #
    nl = L_pad // block_q
    qkv_shape = jax.ShapeDtypeStruct((B, num_heads, L_pad, dh), compute_dtype)
    q_hd, k_hd, v_hd = pl.pallas_call(
        functools.partial(_qkv_proj_kernel, d_head=dh),
        out_shape=(qkv_shape, qkv_shape, qkv_shape),
        grid=(num_heads, B, nl),         # head outermost: each weight slab DMA'd once
        in_specs=[
            pl.BlockSpec((1, block_q, D), lambda h, b, l: (b, l, 0)),
            pl.BlockSpec((1, D, 3 * dh), lambda h, b, l: (h, 0, 0)),
            pl.BlockSpec((1, 1, 3 * dh), lambda h, b, l: (h, 0, 0)),
        ],
        out_specs=(
            pl.BlockSpec((1, 1, block_q, dh), lambda h, b, l: (b, h, l, 0)),
            pl.BlockSpec((1, 1, block_q, dh), lambda h, b, l: (b, h, l, 0)),
            pl.BlockSpec((1, 1, block_q, dh), lambda h, b, l: (b, h, l, 0)),
        ),
        compiler_params=pltpu.CompilerParams(
            dimension_semantics=("parallel", "parallel", "parallel"),
            vmem_limit_bytes=vmem_limit_bytes),
    )(x_c, w_qkv, b_qkv)

    # ------------------------------------------------------------------ #
    # Stage 2: flash attention + output projection.                      #
    # ------------------------------------------------------------------ #
    # Full Wo VMEM-resident (one DMA for the whole kernel) when it fits the budget;
    # otherwise per-head blocks keyed on h (large D / tight v7x VMEM).
    wo_bytes = 2 * D * D * jnp.dtype(compute_dtype).itemsize   # double-buffered
    if wo_bytes <= vmem_limit_bytes // 4:
        wo_spec = pl.BlockSpec((num_heads, dh, D), lambda b, qi, h, ki: (0, 0, 0))
    else:
        wo_spec = pl.BlockSpec((1, dh, D), lambda b, qi, h, ki: (h, 0, 0))

    kv_block = (1, 1, block_kv, dh)
    kv_map = lambda b, qi, h, ki: (b, h, ki, 0)
    if kv_buffers is None:
        kv_spec = pl.BlockSpec(kv_block, kv_map)
    else:
        # Deeper K/V pipelining if DMA latency is exposed (e.g. v5e HBM bandwidth).
        kv_spec = pl.BlockSpec(kv_block, kv_map, pipeline_mode=pl.Buffered(kv_buffers))

    kernel = functools.partial(
        _flash_attn_kernel, seq_len=L, block_kv=block_kv,
        p_dtype=compute_dtype, approx_recip=(compute_dtype != jnp.float32),
        mask_kv=mask_kv)

    out_pad = pl.pallas_call(
        kernel,
        out_shape=jax.ShapeDtypeStruct((B, L_pad, D), x.dtype),
        grid=(B, nq, num_heads, nk),
        in_specs=[
            pl.BlockSpec((1, 1, block_q, dh), lambda b, qi, h, ki: (b, h, qi, 0)),
            kv_spec,
            kv_spec,
            wo_spec,
            pl.BlockSpec((1, D), lambda b, qi, h, ki: (0, 0)),
        ],
        out_specs=pl.BlockSpec((1, block_q, D), lambda b, qi, h, ki: (b, qi, 0)),
        scratch_shapes=[
            pltpu.VMEM((block_q, 1), jnp.float32),    # running max m
            pltpu.VMEM((block_q, 1), jnp.float32),    # running sum l
            pltpu.VMEM((block_q, dh), jnp.float32),   # un-normalized attention acc
            pltpu.VMEM((block_q, D), jnp.float32),    # output-projection accumulator
        ],
        compiler_params=pltpu.CompilerParams(
            dimension_semantics=("parallel", "parallel", "arbitrary", "arbitrary"),
            vmem_limit_bytes=vmem_limit_bytes),
    )(q_hd, k_hd, v_hd, wo_h, bo)

    return out_pad[:, :L, :] if L_pad != L else out_pad


def _reference(x, params, *, num_heads):
    """Pure-JAX reference mirroring the PyTorch forward (top_k=None)."""
    B, L, D = x.shape
    dh = D // num_heads
    q = (x @ params["wq"] + params["bq"]).reshape(B, L, num_heads, dh)
    k = (x @ params["wk"] + params["bk"]).reshape(B, L, num_heads, dh)
    v = (x @ params["wv"] + params["bv"]).reshape(B, L, num_heads, dh)
    scores = jnp.einsum("bihd,bjhd->bijh", q, k) / math.sqrt(dh)
    weights = jax.nn.softmax(scores, axis=2)
    attn = jnp.einsum("bijh,bjhd->bihd", weights, v).reshape(B, L, D)
    return attn @ params["wo"] + params["bo"]


def make_params(key, d_model):
    """Deterministic nn.Linear-style init; weights stored transposed to (D_in, D_out)."""
    keys = jax.random.split(key, 8)
    bound = 1.0 / math.sqrt(d_model)
    def w(k):  # (D_in, D_out)
        return jax.random.uniform(k, (d_model, d_model), jnp.float32, -bound, bound)
    def b(k):  # (1, D_out)
        return jax.random.uniform(k, (1, d_model), jnp.float32, -bound, bound)
    return {"wq": w(keys[0]), "bq": b(keys[1]),
            "wk": w(keys[2]), "bk": b(keys[3]),
            "wv": w(keys[4]), "bv": b(keys[5]),
            "wo": w(keys[6]), "bo": b(keys[7])}


if __name__ == "__main__":
    key = jax.random.PRNGKey(0)
    k1, k2, k3, k4, k5, k6 = jax.random.split(key, 6)

    # f32 tolerance is set above MXU f32-matmul rounding but far below any
    # structural error; bf16 tolerance matches the bf16 compute path.
    F32_TOL = dict(atol=5e-3, rtol=5e-3)
    BF16_TOL = dict(atol=5e-2, rtol=5e-2)

    # --- Config 1: small shapes from the module spec (single q/kv tile). ---
    B, L, d_model, num_heads = 2, 8, 32, 4
    x = jax.random.normal(k1, (B, L, d_model), dtype=jnp.float32)
    params = make_params(k2, d_model)
    ref = _reference(x, params, num_heads=num_heads)

    out_f32 = jax.block_until_ready(
        em_attention_block(x, params, num_heads=num_heads, compute_dtype=jnp.float32))
    assert out_f32.shape == (B, L, d_model)
    assert jnp.allclose(out_f32, ref, **F32_TOL), "f32 mismatch (small)"

    out_bf16 = jax.block_until_ready(
        em_attention_block(x, params, num_heads=num_heads, compute_dtype=jnp.bfloat16))
    assert jnp.allclose(out_bf16, ref, **BF16_TOL), "bf16 mismatch (small)"

    # --- Config 2: exercises the flash tiling (2 q-tiles x 4 heads x 2 kv-tiles). ---
    B2, L2, d_model2, num_heads2 = 2, 256, 128, 4
    x2 = jax.random.normal(k3, (B2, L2, d_model2), dtype=jnp.float32)
    params2 = make_params(k4, d_model2)
    ref2 = _reference(x2, params2, num_heads=num_heads2)

    out2 = jax.block_until_ready(
        em_attention_block(x2, params2, num_heads=num_heads2,
                           block_q=128, block_kv=128, compute_dtype=jnp.bfloat16))
    assert jnp.allclose(out2, ref2, **BF16_TOL), "bf16 mismatch (tiled)"

    # --- Config 3: non-divisible L exercises padding + kv masking. ---
    B3, L3, d_model3, num_heads3 = 1, 100, 64, 2
    x3 = jax.random.normal(k5, (B3, L3, d_model3), dtype=jnp.float32)
    params3 = make_params(k6, d_model3)
    ref3 = _reference(x3, params3, num_heads=num_heads3)

    out3 = jax.block_until_ready(
        em_attention_block(x3, params3, num_heads=num_heads3,
                           block_q=64, block_kv=64, compute_dtype=jnp.float32))
    assert out3.shape == (B3, L3, d_model3)
    assert jnp.allclose(out3, ref3, **F32_TOL), "f32 mismatch (padded/masked)"

    print("KERNEL_OK")
</pallas_src>

<mosaic_0001>
module attributes {stable_mosaic.version = 11 : i64} {
  func.func @_qkv_proj_kernel(%arg0: i32, %arg1: i32, %arg2: i32, %arg3: memref<1x8x32xf32, #tpu.memory_space<vmem>>, %arg4: memref<1x32x24xf32, #tpu.memory_space<vmem>>, %arg5: memref<1x1x24xf32, #tpu.memory_space<vmem>>, %arg6: memref<1x1x8x8xf32, #tpu.memory_space<vmem>>, %arg7: memref<1x1x8x8xf32, #tpu.memory_space<vmem>>, %arg8: memref<1x1x8x8xf32, #tpu.memory_space<vmem>>) attributes {dimension_semantics = [#tpu.dimension_semantics<parallel>, #tpu.dimension_semantics<parallel>, #tpu.dimension_semantics<parallel>], iteration_bounds = array<i64: 4, 2, 1>, scalar_prefetch = 0 : i64, scratch_operands = 0 : i64, tpu.core_type = #tpu.core_type<tc>, window_params = [{transform_indices = @transform_0, window_bounds = array<i64: 1, 8, 32>}, {transform_indices = @transform_1, window_bounds = array<i64: 1, 32, 24>}, {transform_indices = @transform_2, window_bounds = array<i64: 1, 1, 24>}, {transform_indices = @transform_3, window_bounds = array<i64: 1, 1, 8, 8>}, {transform_indices = @transform_4, window_bounds = array<i64: 1, 1, 8, 8>}, {transform_indices = @transform_5, window_bounds = array<i64: 1, 1, 8, 8>}]} {
    %c0 = arith.constant 0 : index
    %c0_0 = arith.constant 0 : index
    %c0_1 = arith.constant 0 : index
    %0 = vector.load %arg3[%c0, %c0_0, %c0_1] : memref<1x8x32xf32, #tpu.memory_space<vmem>>, vector<1x8x32xf32>
    %1 = vector.shape_cast %0 : vector<1x8x32xf32> to vector<8x32xf32>
    %c0_2 = arith.constant 0 : index
    %c0_3 = arith.constant 0 : index
    %c0_4 = arith.constant 0 : index
    %2 = vector.load %arg4[%c0_2, %c0_3, %c0_4] : memref<1x32x24xf32, #tpu.memory_space<vmem>>, vector<1x32x24xf32>
    %3 = vector.shape_cast %2 : vector<1x32x24xf32> to vector<32x24xf32>
    %cst = arith.constant dense<0.000000e+00> : vector<8x24xf32>
    %4 = tpu.matmul %1, %3, %cst {dimension_numbers = #tpu.dot_dimension_numbers<[1], [0], [0], [1], [0, 0, 1, 1], [], []>} : vector<8x32xf32>, vector<32x24xf32>, vector<8x24xf32> -> vector<8x24xf32>
    %c0_5 = arith.constant 0 : index
    %c0_6 = arith.constant 0 : index
    %c0_7 = arith.constant 0 : index
    %5 = vector.load %arg5[%c0_5, %c0_6, %c0_7] : memref<1x1x24xf32, #tpu.memory_space<vmem>>, vector<1x1x24xf32>
    %6 = vector.shape_cast %5 : vector<1x1x24xf32> to vector<1x24xf32>
    %7 = vector.broadcast %6 : vector<1x24xf32> to vector<8x24xf32>
    %8 = arith.addf %4, %7 : vector<8x24xf32>
    %9 = vector.extract_strided_slice %8 {offsets = [0, 0], sizes = [8, 8], strides = [1, 1]} : vector<8x24xf32> to vector<8x8xf32>
    %c0_8 = arith.constant 0 : index
    %c0_9 = arith.constant 0 : index
    %c0_10 = arith.constant 0 : index
    %c0_11 = arith.constant 0 : index
    %10 = vector.load %arg6[%c0_8, %c0_9, %c0_10, %c0_11] : memref<1x1x8x8xf32, #tpu.memory_space<vmem>>, vector<1x1x8x8xf32>
    %11 = vector.shape_cast %10 : vector<1x1x8x8xf32> to vector<8x8xf32>
    %12 = vector.shape_cast %9 : vector<8x8xf32> to vector<1x1x8x8xf32>
    tpu.vector_store %arg6[%c0_8, %c0_9, %c0_10, %c0_11], %12 {strides = array<i32>} : memref<1x1x8x8xf32, #tpu.memory_space<vmem>>, vector<1x1x8x8xf32>,
    %13 = vector.extract_strided_slice %8 {offsets = [0, 8], sizes = [8, 8], strides = [1, 1]} : vector<8x24xf32> to vector<8x8xf32>
    %c0_12 = arith.constant 0 : index
    %c0_13 = arith.constant 0 : index
    %c0_14 = arith.constant 0 : index
    %c0_15 = arith.constant 0 : index
    %14 = vector.load %arg7[%c0_12, %c0_13, %c0_14, %c0_15] : memref<1x1x8x8xf32, #tpu.memory_space<vmem>>, vector<1x1x8x8xf32>
    %15 = vector.shape_cast %14 : vector<1x1x8x8xf32> to vector<8x8xf32>
    %16 = vector.shape_cast %13 : vector<8x8xf32> to vector<1x1x8x8xf32>
    tpu.vector_store %arg7[%c0_12, %c0_13, %c0_14, %c0_15], %16 {strides = array<i32>} : memref<1x1x8x8xf32, #tpu.memory_space<vmem>>, vector<1x1x8x8xf32>,
    %17 = vector.extract_strided_slice %8 {offsets = [0, 16], sizes = [8, 8], strides = [1, 1]} : vector<8x24xf32> to vector<8x8xf32>
    %c0_16 = arith.constant 0 : index
    %c0_17 = arith.constant 0 : index
    %c0_18 = arith.constant 0 : index
    %c0_19 = arith.constant 0 : index
    %18 = vector.load %arg8[%c0_16, %c0_17, %c0_18, %c0_19] : memref<1x1x8x8xf32, #tpu.memory_space<vmem>>, vector<1x1x8x8xf32>
    %19 = vector.shape_cast %18 : vector<1x1x8x8xf32> to vector<8x8xf32>
    %20 = vector.shape_cast %17 : vector<8x8xf32> to vector<1x1x8x8xf32>
    tpu.vector_store %arg8[%c0_16, %c0_17, %c0_18, %c0_19], %20 {strides = array<i32>} : memref<1x1x8x8xf32, #tpu.memory_space<vmem>>, vector<1x1x8x8xf32>,
    return
  }
  func.func @transform_0(%arg0: i32, %arg1: i32, %arg2: i32) -> (i32, i32, i32) {
    %c0_i32 = arith.constant 0 : i32
    %c0_i32_0 = arith.constant 0 : i32
    return %arg1, %arg2, %c0_i32 : i32, i32, i32
  }
  func.func @transform_1(%arg0: i32, %arg1: i32, %arg2: i32) -> (i32, i32, i32) {
    %c0_i32 = arith.constant 0 : i32
    %c0_i32_0 = arith.constant 0 : i32
    %c0_i32_1 = arith.constant 0 : i32
    return %arg0, %c0_i32, %c0_i32_0 : i32, i32, i32
  }
  func.func @transform_2(%arg0: i32, %arg1: i32, %arg2: i32) -> (i32, i32, i32) {
    %c0_i32 = arith.constant 0 : i32
    %c0_i32_0 = arith.constant 0 : i32
    %c0_i32_1 = arith.constant 0 : i32
    return %arg0, %c0_i32, %c0_i32_0 : i32, i32, i32
  }
  func.func @transform_3(%arg0: i32, %arg1: i32, %arg2: i32) -> (i32, i32, i32, i32) {
    %c0_i32 = arith.constant 0 : i32
    %c0_i32_0 = arith.constant 0 : i32
    return %arg1, %arg0, %arg2, %c0_i32 : i32, i32, i32, i32
  }
  func.func @transform_4(%arg0: i32, %arg1: i32, %arg2: i32) -> (i32, i32, i32, i32) {
    %c0_i32 = arith.constant 0 : i32
    %c0_i32_0 = arith.constant 0 : i32
    return %arg1, %arg0, %arg2, %c0_i32 : i32, i32, i32, i32
  }
  func.func @transform_5(%arg0: i32, %arg1: i32, %arg2: i32) -> (i32, i32, i32, i32) {
    %c0_i32 = arith.constant 0 : i32
    %c0_i32_0 = arith.constant 0 : i32
    return %arg1, %arg0, %arg2, %c0_i32 : i32, i32, i32, i32
  }
}

module attributes {stable_mosaic.version = 11 : i64} {
  func.func @_flash_attn_kernel(%arg0: i32, %arg1: i32, %arg2: i32, %arg3: i32, %arg4: memref<1x1x8x8xf32, #tpu.memory_space<vmem>>, %arg5: memref<1x1x8x8xf32, #tpu.memory_space<vmem>>, %arg6: memref<1x1x8x8xf32, #tpu.memory_space<vmem>>, %arg7: memref<4x8x32xf32, #tpu.memory_space<vmem>>, %arg8: memref<1x32xf32, #tpu.memory_space<vmem>>, %arg9: memref<1x8x32xf32, #tpu.memory_space<vmem>>, %arg10: memref<8x1xf32, #tpu.memory_space<vmem>>, %arg11: memref<8x1xf32, #tpu.memory_space<vmem>>, %arg12: memref<8x8xf32, #tpu.memory_space<vmem>>, %arg13: memref<8x32xf32, #tpu.memory_space<vmem>>) attributes {dimension_semantics = [#tpu.dimension_semantics<parallel>, #tpu.dimension_semantics<parallel>, #tpu.dimension_semantics<arbitrary>, #tpu.dimension_semantics<arbitrary>], iteration_bounds = array<i64: 2, 1, 4, 1>, scalar_prefetch = 0 : i64, scratch_operands = 4 : i64, tpu.core_type = #tpu.core_type<tc>, window_params = [{transform_indices = @transform_0, window_bounds = array<i64: 1, 1, 8, 8>}, {transform_indices = @transform_1, window_bounds = array<i64: 1, 1, 8, 8>}, {transform_indices = @transform_2, window_bounds = array<i64: 1, 1, 8, 8>}, {pipeline_mode = #tpu.pipeline_mode<synchronous>, transform_indices = @transform_3, window_bounds = array<i64: 4, 8, 32>}, {pipeline_mode = #tpu.pipeline_mode<synchronous>, transform_indices = @transform_4, window_bounds = array<i64: 1, 32>}, {transform_indices = @transform_5, window_bounds = array<i64: 1, 8, 32>}]} {
    %c0_i32 = arith.constant 0 : i32
    %0 = arith.cmpi eq, %arg2, %c0_i32 : i32
    %c0_i32_0 = arith.constant 0 : i32
    %1 = arith.cmpi eq, %arg3, %c0_i32_0 : i32
    %2 = arith.andi %0, %1 : i1
    %3 = arith.extui %2 : i1 to i32
    %c0_i32_1 = arith.constant 0 : i32
    %4 = arith.cmpi ne, %3, %c0_i32_1 : i32
    scf.if %4 {
      %cst_34 = arith.constant 0.000000e+00 : f32
      %45 = vector.broadcast %cst_34 : f32 to vector<8x32xf32>
      %c0_35 = arith.constant 0 : index
      %c0_36 = arith.constant 0 : index
      %46 = vector.load %arg13[%c0_35, %c0_36] : memref<8x32xf32, #tpu.memory_space<vmem>>, vector<8x32xf32>
      tpu.vector_store %arg13[%c0_35, %c0_36], %45 {strides = array<i32>} : memref<8x32xf32, #tpu.memory_space<vmem>>, vector<8x32xf32>,
    } else {
    }
    %c0_i32_2 = arith.constant 0 : i32
    %5 = arith.cmpi eq, %arg3, %c0_i32_2 : i32
    %6 = arith.extui %5 : i1 to i32
    %c0_i32_3 = arith.constant 0 : i32
    %7 = arith.cmpi ne, %6, %c0_i32_3 : i32
    scf.if %7 {
      %cst_34 = arith.constant 0xFF800000 : f32
      %45 = vector.broadcast %cst_34 : f32 to vector<8x1xf32>
      %c0_35 = arith.constant 0 : index
      %c0_36 = arith.constant 0 : index
      %46 = vector.load %arg10[%c0_35, %c0_36] : memref<8x1xf32, #tpu.memory_space<vmem>>, vector<8x1xf32>
      tpu.vector_store %arg10[%c0_35, %c0_36], %45 {strides = array<i32>} : memref<8x1xf32, #tpu.memory_space<vmem>>, vector<8x1xf32>,
      %cst_37 = arith.constant 0.000000e+00 : f32
      %47 = vector.broadcast %cst_37 : f32 to vector<8x1xf32>
      %c0_38 = arith.constant 0 : index
      %c0_39 = arith.constant 0 : index
      %48 = vector.load %arg11[%c0_38, %c0_39] : memref<8x1xf32, #tpu.memory_space<vmem>>, vector<8x1xf32>
      tpu.vector_store %arg11[%c0_38, %c0_39], %47 {strides = array<i32>} : memref<8x1xf32, #tpu.memory_space<vmem>>, vector<8x1xf32>,
      %cst_40 = arith.constant 0.000000e+00 : f32
      %49 = vector.broadcast %cst_40 : f32 to vector<8x8xf32>
      %c0_41 = arith.constant 0 : index
      %c0_42 = arith.constant 0 : index
      %50 = vector.load %arg12[%c0_41, %c0_42] : memref<8x8xf32, #tpu.memory_space<vmem>>, vector<8x8xf32>
      tpu.vector_store %arg12[%c0_41, %c0_42], %49 {strides = array<i32>} : memref<8x8xf32, #tpu.memory_space<vmem>>, vector<8x8xf32>,
    } else {
    }
    %c0 = arith.constant 0 : index
    %c0_4 = arith.constant 0 : index
    %c0_5 = arith.constant 0 : index
    %c0_6 = arith.constant 0 : index
    %8 = vector.load %arg4[%c0, %c0_4, %c0_5, %c0_6] : memref<1x1x8x8xf32, #tpu.memory_space<vmem>>, vector<1x1x8x8xf32>
    %9 = vector.shape_cast %8 : vector<1x1x8x8xf32> to vector<8x8xf32>
    %c0_7 = arith.constant 0 : index
    %c0_8 = arith.constant 0 : index
    %c0_9 = arith.constant 0 : index
    %c0_10 = arith.constant 0 : index
    %10 = vector.load %arg5[%c0_7, %c0_8, %c0_9, %c0_10] : memref<1x1x8x8xf32, #tpu.memory_space<vmem>>, vector<1x1x8x8xf32>
    %11 = vector.shape_cast %10 : vector<1x1x8x8xf32> to vector<8x8xf32>
    %c0_11 = arith.constant 0 : index
    %c0_12 = arith.constant 0 : index
    %c0_13 = arith.constant 0 : index
    %c0_14 = arith.constant 0 : index
    %12 = vector.load %arg6[%c0_11, %c0_12, %c0_13, %c0_14] : memref<1x1x8x8xf32, #tpu.memory_space<vmem>>, vector<1x1x8x8xf32>
    %13 = vector.shape_cast %12 : vector<1x1x8x8xf32> to vector<8x8xf32>
    %cst = arith.constant dense<0.000000e+00> : vector<8x8xf32>
    %14 = tpu.matmul %9, %11, %cst {dimension_numbers = #tpu.dot_dimension_numbers<[1], [1], [0], [0], [0, 0, 1, 0], [], []>} : vector<8x8xf32>, vector<8x8xf32>, vector<8x8xf32> -> vector<8x8xf32>
    %c0_15 = arith.constant 0 : index
    %c0_16 = arith.constant 0 : index
    %15 = vector.load %arg10[%c0_15, %c0_16] : memref<8x1xf32, #tpu.memory_space<vmem>>, vector<8x1xf32>
    %cst_17 = arith.constant dense<0xFF800000> : vector<8xf32>
    %16 = vector.multi_reduction <maximumf>, %14, %cst_17 [1] : vector<8x8xf32> to vector<8xf32>
    %17 = vector.shape_cast %16 : vector<8xf32> to vector<8x1xf32>
    %18 = arith.maximumf %15, %17 : vector<8x1xf32>
    %19 = arith.subf %15, %18 : vector<8x1xf32>
    %20 = math.exp %19 : vector<8x1xf32>
    %21 = vector.broadcast %18 : vector<8x1xf32> to vector<8x8xf32>
    %22 = arith.subf %14, %21 : vector<8x8xf32>
    %23 = math.exp %22 : vector<8x8xf32>
    %c0_18 = arith.constant 0 : index
    %c0_19 = arith.constant 0 : index
    %24 = vector.load %arg11[%c0_18, %c0_19] : memref<8x1xf32, #tpu.memory_space<vmem>>, vector<8x1xf32>
    %25 = arith.mulf %20, %24 : vector<8x1xf32>
    %cst_20 = arith.constant dense<0.000000e+00> : vector<8xf32>
    %26 = vector.multi_reduction <add>, %23, %cst_20 [1] : vector<8x8xf32> to vector<8xf32>
    %27 = vector.shape_cast %26 : vector<8xf32> to vector<8x1xf32>
    %28 = arith.addf %25, %27 : vector<8x1xf32>
    %c0_21 = arith.constant 0 : index
    %c0_22 = arith.constant 0 : index
    %29 = vector.load %arg11[%c0_21, %c0_22] : memref<8x1xf32, #tpu.memory_space<vmem>>, vector<8x1xf32>
    tpu.vector_store %arg11[%c0_21, %c0_22], %28 {strides = array<i32>} : memref<8x1xf32, #tpu.memory_space<vmem>>, vector<8x1xf32>,
    %c0_23 = arith.constant 0 : index
    %c0_24 = arith.constant 0 : index
    %30 = vector.load %arg12[%c0_23, %c0_24] : memref<8x8xf32, #tpu.memory_space<vmem>>, vector<8x8xf32>
    %31 = vector.broadcast %20 : vector<8x1xf32> to vector<8x8xf32>
    %32 = arith.mulf %31, %30 : vector<8x8xf32>
    %cst_25 = arith.constant dense<0.000000e+00> : vector<8x8xf32>
    %33 = tpu.matmul %23, %13, %cst_25 {dimension_numbers = #tpu.dot_dimension_numbers<[1], [0], [0], [1], [0, 0, 1, 1], [], []>} : vector<8x8xf32>, vector<8x8xf32>, vector<8x8xf32> -> vector<8x8xf32>
    %34 = arith.addf %32, %33 : vector<8x8xf32>
    %c0_26 = arith.constant 0 : index
    %c0_27 = arith.constant 0 : index
    %35 = vector.load %arg12[%c0_26, %c0_27] : memref<8x8xf32, #tpu.memory_space<vmem>>, vector<8x8xf32>
    tpu.vector_store %arg12[%c0_26, %c0_27], %34 {strides = array<i32>} : memref<8x8xf32, #tpu.memory_space<vmem>>, vector<8x8xf32>,
    %c0_28 = arith.constant 0 : index
    %c0_29 = arith.constant 0 : index
    %36 = vector.load %arg10[%c0_28, %c0_29] : memref<8x1xf32, #tpu.memory_space<vmem>>, vector<8x1xf32>
    tpu.vector_store %arg10[%c0_28, %c0_29], %18 {strides = array<i32>} : memref<8x1xf32, #tpu.memory_space<vmem>>, vector<8x1xf32>,
    %c0_i32_30 = arith.constant 0 : i32
    %37 = arith.cmpi eq, %arg3, %c0_i32_30 : i32
    %38 = arith.extui %37 : i1 to i32
    %c0_i32_31 = arith.constant 0 : i32
    %39 = arith.cmpi ne, %38, %c0_i32_31 : i32
    scf.if %39 {
      %c0_34 = arith.constant 0 : index
      %c0_35 = arith.constant 0 : index
      %45 = vector.load %arg12[%c0_34, %c0_35] : memref<8x8xf32, #tpu.memory_space<vmem>>, vector<8x8xf32>
      %c0_36 = arith.constant 0 : index
      %c0_37 = arith.constant 0 : index
      %46 = vector.load %arg11[%c0_36, %c0_37] : memref<8x1xf32, #tpu.memory_space<vmem>>, vector<8x1xf32>
      %47 = tpu.reciprocal %46 : vector<8x1xf32> -> vector<8x1xf32>
      %48 = vector.broadcast %47 : vector<8x1xf32> to vector<8x8xf32>
      %49 = arith.mulf %45, %48 : vector<8x8xf32>
      %50 = arith.index_cast %arg2 : i32 to index
      %c0_38 = arith.constant 0 : index
      %c0_39 = arith.constant 0 : index
      %51 = vector.load %arg7[%50, %c0_38, %c0_39] : memref<4x8x32xf32, #tpu.memory_space<vmem>>, vector<1x8x32xf32>
      %52 = vector.shape_cast %51 : vector<1x8x32xf32> to vector<8x32xf32>
      %c0_40 = arith.constant 0 : index
      %c0_41 = arith.constant 0 : index
      %53 = vector.load %arg13[%c0_40, %c0_41] : memref<8x32xf32, #tpu.memory_space<vmem>>, vector<8x32xf32>
      %cst_42 = arith.constant dense<0.000000e+00> : vector<8x32xf32>
      %54 = tpu.matmul %49, %52, %cst_42 {dimension_numbers = #tpu.dot_dimension_numbers<[1], [0], [0], [1], [0, 0, 1, 1], [], []>} : vector<8x8xf32>, vector<8x32xf32>, vector<8x32xf32> -> vector<8x32xf32>
      %55 = arith.addf %53, %54 : vector<8x32xf32>
      %c0_43 = arith.constant 0 : index
      %c0_44 = arith.constant 0 : index
      %56 = vector.load %arg13[%c0_43, %c0_44] : memref<8x32xf32, #tpu.memory_space<vmem>>, vector<8x32xf32>
      tpu.vector_store %arg13[%c0_43, %c0_44], %55 {strides = array<i32>} : memref<8x32xf32, #tpu.memory_space<vmem>>, vector<8x32xf32>,
    } else {
    }
    %c3_i32 = arith.constant 3 : i32
    %40 = arith.cmpi eq, %arg2, %c3_i32 : i32
    %c0_i32_32 = arith.constant 0 : i32
    %41 = arith.cmpi eq, %arg3, %c0_i32_32 : i32
    %42 = arith.andi %40, %41 : i1
    %43 = arith.extui %42 : i1 to i32
    %c0_i32_33 = arith.constant 0 : i32
    %44 = arith.cmpi ne, %43, %c0_i32_33 : i32
    scf.if %44 {
      %c0_34 = arith.constant 0 : index
      %c0_35 = arith.constant 0 : index
      %45 = vector.load %arg13[%c0_34, %c0_35] : memref<8x32xf32, #tpu.memory_space<vmem>>, vector<8x32xf32>
      %c0_36 = arith.constant 0 : index
      %c0_37 = arith.constant 0 : index
      %46 = vector.load %arg8[%c0_36, %c0_37] : memref<1x32xf32, #tpu.memory_space<vmem>>, vector<1x32xf32>
      %47 = vector.broadcast %46 : vector<1x32xf32> to vector<8x32xf32>
      %48 = arith.addf %45, %47 : vector<8x32xf32>
      %c0_38 = arith.constant 0 : index
      %c0_39 = arith.constant 0 : index
      %c0_40 = arith.constant 0 : index
      %49 = vector.load %arg9[%c0_38, %c0_39, %c0_40] : memref<1x8x32xf32, #tpu.memory_space<vmem>>, vector<1x8x32xf32>
      %50 = vector.shape_cast %49 : vector<1x8x32xf32> to vector<8x32xf32>
      %51 = vector.shape_cast %48 : vector<8x32xf32> to vector<1x8x32xf32>
      tpu.vector_store %arg9[%c0_38, %c0_39, %c0_40], %51 {strides = array<i32>} : memref<1x8x32xf32, #tpu.memory_space<vmem>>, vector<1x8x32xf32>,
    } else {
    }
    return
  }
  func.func @transform_0(%arg0: i32, %arg1: i32, %arg2: i32, %arg3: i32) -> (i32, i32, i32, i32) {
    %c0_i32 = arith.constant 0 : i32
    %c0_i32_0 = arith.constant 0 : i32
    return %arg0, %arg2, %arg1, %c0_i32 : i32, i32, i32, i32
  }
  func.func @transform_1(%arg0: i32, %arg1: i32, %arg2: i32, %arg3: i32) -> (i32, i32, i32, i32) {
    %c0_i32 = arith.constant 0 : i32
    %c0_i32_0 = arith.constant 0 : i32
    return %arg0, %arg2, %arg3, %c0_i32 : i32, i32, i32, i32
  }
  func.func @transform_2(%arg0: i32, %arg1: i32, %arg2: i32, %arg3: i32) -> (i32, i32, i32, i32) {
    %c0_i32 = arith.constant 0 : i32
    %c0_i32_0 = arith.constant 0 : i32
    return %arg0, %arg2, %arg3, %c0_i32 : i32, i32, i32, i32
  }
  func.func @transform_3(%arg0: i32, %arg1: i32, %arg2: i32, %arg3: i32) -> (i32, i32, i32) {
    %c0_i32 = arith.constant 0 : i32
    %c0_i32_0 = arith.constant 0 : i32
    %c0_i32_1 = arith.constant 0 : i32
    %c0_i32_2 = arith.constant 0 : i32
    return %c0_i32, %c0_i32_0, %c0_i32_1 : i32, i32, i32
  }
  func.func @transform_4(%arg0: i32, %arg1: i32, %arg2: i32, %arg3: i32) -> (i32, i32) {
    %c0_i32 = arith.constant 0 : i32
    %c0_i32_0 = arith.constant 0 : i32
    %c0_i32_1 = arith.constant 0 : i32
    return %c0_i32, %c0_i32_0 : i32, i32
  }
  func.func @transform_5(%arg0: i32, %arg1: i32, %arg2: i32, %arg3: i32) -> (i32, i32, i32) {
    %c0_i32 = arith.constant 0 : i32
    %c0_i32_0 = arith.constant 0 : i32
    return %arg0, %arg1, %c0_i32 : i32, i32, i32
  }
}

</mosaic_0001>

<llo_original>
// kernel: em_attention_block.2
$region0: #{em_attention_block.2}
  #allocation0 [shape = 'u32[]', space=smem, size = 0x4, offset = 0x4, fixed_abs, tag = 'smem constant byte address 0x4 - core index']
  #allocation1 [shape = 'u32[144,128]{1,0:T(1,128)}', space=vmem, size = 0x12000, scoped, tag = 'internal scratch']
  %s0 = inlined_call_operand.vmem [shape: f32[2,8,32], index: 0, kind: input, shape index: {}]
  %s1 = inlined_call_operand.vmem [shape: f32[4,32,24], index: 1, kind: input, shape index: {}]
  %s2 = inlined_call_operand.vmem [shape: f32[4,1,24], index: 2, kind: input, shape index: {}]
  %s3 = inlined_call_operand.vmem [shape: f32[2,4,8,8], index: 3, kind: output, shape index: {0}]
  %s4 = inlined_call_operand.vmem [shape: f32[2,4,8,8], index: 4, kind: output, shape index: {1}]
  %s5 = inlined_call_operand.vmem [shape: f32[2,4,8,8], index: 5, kind: output, shape index: {2}]
  %6 = xla_tuple %s3, %s4, %s5
  %s7 = sld [smem:[#allocation0]]
  $region61: #{em_attention_block.2} parent=0
    _
  %s9 = ssub.s32 1, %s7
  %s10 = scalar_select 0, %s9, %s7
  loop: start=0, step=1, limit=10
  $region2: #{em_attention_block.2} parent=0 // loop_pre_header
    _
  $region3: #{em_attention_block.2} parent=0 // loop_header
    %s12 = sphi 0, %s16
    %p13 = scmp.ge.s32.totalorder %s12, 10
    %s19 = sphi 0, %s38
    %s20 = sphi 0, %s34
    %s21 = sphi 0, %s30
    %s22 = sphi 0, %s19
    %s23 = sphi 0, %s20
    %s24 = sphi 0, %s21
    %s25 = sphi 0, %s22
    %s26 = sphi 0, %s23
    %s27 = sphi 0, %s24
    %s43 = sphi 0, %s45
    %s46 = sphi 0, %s43
    %s47 = sphi 0, %s46
    %s63 = sphi 0, %s47
    %s69 = sphi 0, %s71
    %s72 = sphi 0, %s69
    %s73 = sphi 0, %s72
    %s89 = sphi 0, %s73
    %s95 = sphi 0, %s97
    %s98 = sphi 0, %s95
    %s99 = sphi 0, %s98
    %s115 = sphi 0, %s99
    %s125 = sphi 0, %s127
    %s128 = sphi 0, %s125
    %s129 = sphi 0, %s128
    %s145 = sphi 0, %s129
    %s155 = sphi 0, %s157
    %s158 = sphi 0, %s155
    %s159 = sphi 0, %s158
    %s175 = sphi 0, %s159
    %s185 = sphi 0, %s187
    %s188 = sphi 0, %s185
    %s189 = sphi 0, %s188
    %s205 = sphi 0, %s189
  $region4: #{em_attention_block.2} parent=0 // loop_header_branch
    %15 = sbr.rel (%p13) target = $region8
  $region5: #{em_attention_block.2} parent=0 // loop_body
    %s17 = ssub.s32 %s12, 1
    %s18 = ssub.s32 %s12, 2
    %s28 = sadd.s32 1, %s21
    %p29 = scmp.ge.s32.totalorder %s28, 1
    %s30 = scalar_select %p29, 0, %s28
    %s31 = sadd.s32 1, %s20
    %s32 = scalar_select %p29, %s31, %s20
    %p33 = scmp.ge.s32.totalorder %s32, 2
    %s34 = scalar_select %p33, 0, %s32
    %s35 = sadd.s32 1, %s19
    %s36 = scalar_select %p33, %s35, %s19
    %p37 = scmp.ge.s32.totalorder %s36, 4
    %s38 = scalar_select %p37, 0, %s36
    %s39 = ssub.s32 %s20, %s34
    %s40 = ssub.s32 %s21, %s30
    %s41 = sor.u32 %s39, %s40
    %p42 = scmp.eq.s32.totalorder %s41, 0
    %s44 = sadd.s32 %s43, 1
    %s45 = scalar_select %p42, %s43, %s44
    %p48 = pneg %p42
    %p49 = scmp.eq.s32.totalorder %s12, 7
    %p50 = por %p48, %p49
    %p51 = scmp.ne.s32.totalorder %s43, %s46
    %p52 = scmp.eq.s32.totalorder %s12, 0
    %p53 = por %p51, %p52
    %p54 = scmp.ne.s32.totalorder %s43, %s46
    %p55 = scmp.eq.s32.totalorder %s17, 7
    %p56 = por %p54, %p55
    %p57 = scmp.ne.s32.totalorder %s46, %s47
    %p58 = scmp.eq.s32.totalorder %s17, 0
    %p59 = por %p57, %p58
    %p60 = scmp.ne.s32.totalorder %s46, %s47
    %p61 = scmp.eq.s32.totalorder %s18, 7
    %p62 = por %p60, %p61
    %p64 = scmp.ne.s32.totalorder %s47, %s63
    %p65 = scmp.eq.s32.totalorder %s18, 0
    %p66 = por %p64, %p65
    %s67 = ssub.s32 %s19, %s38
    %p68 = scmp.eq.s32.totalorder %s67, 0
    %s70 = sadd.s32 %s69, 1
    %s71 = scalar_select %p68, %s69, %s70
    %p74 = pneg %p68
    %p75 = scmp.eq.s32.totalorder %s12, 7
    %p76 = por %p74, %p75
    %p77 = scmp.ne.s32.totalorder %s69, %s72
    %p78 = scmp.eq.s32.totalorder %s12, 0
    %p79 = por %p77, %p78
    %p80 = scmp.ne.s32.totalorder %s69, %s72
    %p81 = scmp.eq.s32.totalorder %s17, 7
    %p82 = por %p80, %p81
    %p83 = scmp.ne.s32.totalorder %s72, %s73
    %p84 = scmp.eq.s32.totalorder %s17, 0
    %p85 = por %p83, %p84
    %p86 = scmp.ne.s32.totalorder %s72, %s73
    %p87 = scmp.eq.s32.totalorder %s18, 7
    %p88 = por %p86, %p87
    %p90 = scmp.ne.s32.totalorder %s73, %s89
    %p91 = scmp.eq.s32.totalorder %s18, 0
    %p92 = por %p90, %p91
    %s93 = ssub.s32 %s19, %s38
    %p94 = scmp.eq.s32.totalorder %s93, 0
    %s96 = sadd.s32 %s95, 1
    %s97 = scalar_select %p94, %s95, %s96
    %p100 = pneg %p94
    %p101 = scmp.eq.s32.totalorder %s12, 7
    %p102 = por %p100, %p101
    %p103 = scmp.ne.s32.totalorder %s95, %s98
    %p104 = scmp.eq.s32.totalorder %s12, 0
    %p105 = por %p103, %p104
    %p106 = scmp.ne.s32.totalorder %s95, %s98
    %p107 = scmp.eq.s32.totalorder %s17, 7
    %p108 = por %p106, %p107
    %p109 = scmp.ne.s32.totalorder %s98, %s99
    %p110 = scmp.eq.s32.totalorder %s17, 0
    %p111 = por %p109, %p110
    %p112 = scmp.ne.s32.totalorder %s98, %s99
    %p113 = scmp.eq.s32.totalorder %s18, 7
    %p114 = por %p112, %p113
    %p116 = scmp.ne.s32.totalorder %s99, %s115
    %p117 = scmp.eq.s32.totalorder %s18, 0
    %p118 = por %p116, %p117
    %s119 = ssub.s32 %s20, %s34
    %s120 = ssub.s32 %s19, %s38
    %s121 = sor.u32 %s119, %s120
    %s122 = ssub.s32 %s21, %s30
    %s123 = sor.u32 %s121, %s122
    %p124 = scmp.eq.s32.totalorder %s123, 0
    %s126 = sadd.s32 %s125, 1
    %s127 = scalar_select %p124, %s125, %s126
    %p130 = pneg %p124
    %p131 = scmp.eq.s32.totalorder %s12, 7
    %p132 = por %p130, %p131
    %p133 = scmp.ne.s32.totalorder %s125, %s128
    %p134 = scmp.eq.s32.totalorder %s12, 0
    %p135 = por %p133, %p134
    %p136 = scmp.ne.s32.totalorder %s125, %s128
    %p137 = scmp.eq.s32.totalorder %s17, 7
    %p138 = por %p136, %p137
    %p139 = scmp.ne.s32.totalorder %s128, %s129
    %p140 = scmp.eq.s32.totalorder %s17, 0
    %p141 = por %p139, %p140
    %p142 = scmp.ne.s32.totalorder %s128, %s129
    %p143 = scmp.eq.s32.totalorder %s18, 7
    %p144 = por %p142, %p143
    %p146 = scmp.ne.s32.totalorder %s129, %s145
    %p147 = scmp.eq.s32.totalorder %s18, 0
    %p148 = por %p146, %p147
    %s149 = ssub.s32 %s20, %s34
    %s150 = ssub.s32 %s19, %s38
    %s151 = sor.u32 %s149, %s150
    %s152 = ssub.s32 %s21, %s30
    %s153 = sor.u32 %s151, %s152
    %p154 = scmp.eq.s32.totalorder %s153, 0
    %s156 = sadd.s32 %s155, 1
    %s157 = scalar_select %p154, %s155, %s156
    %p160 = pneg %p154
    %p161 = scmp.eq.s32.totalorder %s12, 7
    %p162 = por %p160, %p161
    %p163 = scmp.ne.s32.totalorder %s155, %s158
    %p164 = scmp.eq.s32.totalorder %s12, 0
    %p165 = por %p163, %p164
    %p166 = scmp.ne.s32.totalorder %s155, %s158
    %p167 = scmp.eq.s32.totalorder %s17, 7
    %p168 = por %p166, %p167
    %p169 = scmp.ne.s32.totalorder %s158, %s159
    %p170 = scmp.eq.s32.totalorder %s17, 0
    %p171 = por %p169, %p170
    %p172 = scmp.ne.s32.totalorder %s158, %s159
    %p173 = scmp.eq.s32.totalorder %s18, 7
    %p174 = por %p172, %p173
    %p176 = scmp.ne.s32.totalorder %s159, %s175
    %p177 = scmp.eq.s32.totalorder %s18, 0
    %p178 = por %p176, %p177
    %s179 = ssub.s32 %s20, %s34
    %s180 = ssub.s32 %s19, %s38
    %s181 = sor.u32 %s179, %s180
    %s182 = ssub.s32 %s21, %s30
    %s183 = sor.u32 %s181, %s182
    %p184 = scmp.eq.s32.totalorder %s183, 0
    %s186 = sadd.s32 %s185, 1
    %s187 = scalar_select %p184, %s185, %s186
    %p190 = pneg %p184
    %p191 = scmp.eq.s32.totalorder %s12, 7
    %p192 = por %p190, %p191
    %p193 = scmp.ne.s32.totalorder %s185, %s188
    %p194 = scmp.eq.s32.totalorder %s12, 0
    %p195 = por %p193, %p194
    %p196 = scmp.ne.s32.totalorder %s185, %s188
    %p197 = scmp.eq.s32.totalorder %s17, 7
    %p198 = por %p196, %p197
    %p199 = scmp.ne.s32.totalorder %s188, %s189
    %p200 = scmp.eq.s32.totalorder %s17, 0
    %p201 = por %p199, %p200
    %p202 = scmp.ne.s32.totalorder %s188, %s189
    %p203 = scmp.eq.s32.totalorder %s18, 7
    %p204 = por %p202, %p203
    %p206 = scmp.ne.s32.totalorder %s189, %s205
    %p207 = scmp.eq.s32.totalorder %s18, 0
    %p208 = por %p206, %p207
    %p209 = scmp.le.s32.totalorder 1, %s12
    %p210 = scmp.lt.s32.totalorder %s12, 9
    %p211 = pnand %p209, %p210
    %p212 = pneg %p211
    // Predicated region
    $region9: #{em_attention_block.2} parent=5 // pred_check
      _
    $region10: #{em_attention_block.2} parent=5 // pred_check_branch
      %214 = sbr.rel (%p211) target = $region12
    $region11: #{em_attention_block.2} parent=5 // pred_region
      %s215 = ssub.s32 %s12, 1
    $region12: #{em_attention_block.2} parent=5 // pred_fallthru
      _
    %p216 = scmp.lt.s32.totalorder %s12, 8
    // Predicated region
    $region13: #{em_attention_block.2} parent=5 // pred_check
      %p217 = pneg %p216
    $region14: #{em_attention_block.2} parent=5 // pred_check_branch
      %219 = sbr.rel (%p217) target = $region16
    $region15: #{em_attention_block.2} parent=5 // pred_region
      // Predicated region
      $region17: #{em_attention_block.2} parent=15 // pred_check
        %p220 = pneg %p53
      $region18: #{em_attention_block.2} parent=15 // pred_check_branch
        %222 = sbr.rel (%p220) target = $region20
      $region19: #{em_attention_block.2} parent=15 // pred_region
        %p223 = scmp.lt.s32.totalorder %s20, 1
        %s224 = scalar_select %p223, %s20, 1
        %p225 = scmp.lt.s32.totalorder %s21, 0
        %s226 = scalar_select %p225, %s21, 0
        %s227 = sadd.s32 %s226, %s224
        %s228 = smul.addr %s227, 8
        %s229 = scalar_lea.vmem %s0, %s228
      $region20: #{em_attention_block.2} parent=15 // pred_fallthru
        _
      // Predicated region
      $region21: #{em_attention_block.2} parent=15 // pred_check
        %p230 = pneg %p79
      $region22: #{em_attention_block.2} parent=15 // pred_check_branch
        %232 = sbr.rel (%p230) target = $region24
      $region23: #{em_attention_block.2} parent=15 // pred_region
        %p233 = scmp.lt.s32.totalorder %s19, 3
        %s234 = scalar_select %p233, %s19, 3
        %s235 = smul.addr %s234, 4
        %s236 = smul.addr %s235, 8
        %s237 = scalar_lea.vmem %s1, %s236
      $region24: #{em_attention_block.2} parent=15 // pred_fallthru
        _
      // Predicated region
      $region25: #{em_attention_block.2} parent=15 // pred_check
        %p238 = pneg %p105
      $region26: #{em_attention_block.2} parent=15 // pred_check_branch
        %240 = sbr.rel (%p238) target = $region28
      $region27: #{em_attention_block.2} parent=15 // pred_region
        %p241 = scmp.lt.s32.totalorder %s19, 3
        %s242 = scalar_select %p241, %s19, 3
        %s243 = scalar_lea.vmem %s2, %s242
      $region28: #{em_attention_block.2} parent=15 // pred_fallthru
        _
    $region16: #{em_attention_block.2} parent=5 // pred_fallthru
      _
    %p244 = scmp.le.s32.totalorder 1, %s12
    %p245 = scmp.lt.s32.totalorder %s12, 9
    %p246 = pnand %p244, %p245
    %p247 = pneg %p246
    // Predicated region
    $region29: #{em_attention_block.2} parent=5 // pred_check
      _
    $region30: #{em_attention_block.2} parent=5 // pred_check_branch
      %249 = sbr.rel (%p246) target = $region32
    $region31: #{em_attention_block.2} parent=5 // pred_region
      %s250 = ssub.s32 %s12, 1
      %p251 = scmp.lt.s32.totalorder %s23, 1
      %s252 = scalar_select %p251, %s23, 1
      %p253 = scmp.lt.s32.totalorder %s24, 0
      %s254 = scalar_select %p253, %s24, 0
      %s255 = sadd.s32 %s254, %s252
      %s256 = smul.addr %s255, 8
      %s257 = scalar_lea.vmem %s0, %s256
      %p258 = pneg %p59
      %p259 = pneg %p56
      %p260 = scmp.lt.s32.totalorder %s22, 3
      %s261 = scalar_select %p260, %s22, 3
      %s262 = smul.addr %s261, 4
      %s263 = smul.addr %s262, 8
      %s264 = scalar_lea.vmem %s1, %s263
      %p265 = pneg %p85
      %p266 = pneg %p82
      %p267 = scmp.lt.s32.totalorder %s22, 3
      %s268 = scalar_select %p267, %s22, 3
      %s269 = scalar_lea.vmem %s2, %s268
      %p270 = pneg %p111
      %p271 = pneg %p108
      %p272 = pneg %p141
      %p273 = pneg %p138
      %p274 = scmp.lt.s32.totalorder %s23, 1
      %s275 = scalar_select %p274, %s23, 1
      %p276 = scmp.lt.s32.totalorder %s22, 3
      %s277 = scalar_select %p276, %s22, 3
      %p278 = scmp.lt.s32.totalorder %s24, 0
      %s279 = scalar_select %p278, %s24, 0
      %s280 = sadd.s32 %s279, %s277
      %s281 = smul.addr %s275, 4
      %s282 = sadd.s32 %s280, %s281
      %s283 = smul.addr %s282, 8
      %s284 = scalar_lea.vmem %s3, %s283
      %p285 = pneg %p171
      %p286 = pneg %p168
      %p287 = scmp.lt.s32.totalorder %s23, 1
      %s288 = scalar_select %p287, %s23, 1
      %p289 = scmp.lt.s32.totalorder %s22, 3
      %s290 = scalar_select %p289, %s22, 3
      %p291 = scmp.lt.s32.totalorder %s24, 0
      %s292 = scalar_select %p291, %s24, 0
      %s293 = sadd.s32 %s292, %s290
      %s294 = smul.addr %s288, 4
      %s295 = sadd.s32 %s293, %s294
      %s296 = smul.addr %s295, 8
      %s297 = scalar_lea.vmem %s4, %s296
      %p298 = pneg %p201
      %p299 = pneg %p198
      %p300 = scmp.lt.s32.totalorder %s23, 1
      %s301 = scalar_select %p300, %s23, 1
      %p302 = scmp.lt.s32.totalorder %s22, 3
      %s303 = scalar_select %p302, %s22, 3
      %p304 = scmp.lt.s32.totalorder %s24, 0
      %s305 = scalar_select %p304, %s24, 0
      %s306 = sadd.s32 %s305, %s303
      %s307 = smul.addr %s301, 4
      %s308 = sadd.s32 %s306, %s307
      %s309 = smul.addr %s308, 8
      %s310 = scalar_lea.vmem %s5, %s309
      %p311 = scmp.lt.s32.totalorder %s23, 1
      %s312 = scalar_select %p311, %s23, 1
      %p313 = scmp.lt.s32.totalorder %s24, 0
      %s314 = scalar_select %p313, %s24, 0
      %s315 = sadd.s32 %s314, %s312
      %s316 = smul.addr %s315, 8
      %s317 = scalar_lea.vmem %s0, %s316
      %p318 = scmp.lt.s32.totalorder %s22, 3
      %s319 = scalar_select %p318, %s22, 3
      %s320 = smul.addr %s319, 4
      %s321 = smul.addr %s320, 8
      %s322 = scalar_lea.vmem %s1, %s321
      %p323 = scmp.lt.s32.totalorder %s22, 3
      %s324 = scalar_select %p323, %s22, 3
      %s325 = scalar_lea.vmem %s2, %s324
      %p326 = scmp.lt.s32.totalorder %s23, 1
      %s327 = scalar_select %p326, %s23, 1
      %p328 = scmp.lt.s32.totalorder %s22, 3
      %s329 = scalar_select %p328, %s22, 3
      %p330 = scmp.lt.s32.totalorder %s24, 0
      %s331 = scalar_select %p330, %s24, 0
      %s332 = sadd.s32 %s331, %s329
      %s333 = smul.addr %s327, 4
      %s334 = sadd.s32 %s332, %s333
      %s335 = smul.addr %s334, 8
      %s336 = scalar_lea.vmem %s3, %s335
      %p337 = scmp.lt.s32.totalorder %s23, 1
      %s338 = scalar_select %p337, %s23, 1
      %p339 = scmp.lt.s32.totalorder %s22, 3
      %s340 = scalar_select %p339, %s22, 3
      %p341 = scmp.lt.s32.totalorder %s24, 0
      %s342 = scalar_select %p341, %s24, 0
      %s343 = sadd.s32 %s342, %s340
      %s344 = smul.addr %s338, 4
      %s345 = sadd.s32 %s343, %s344
      %s346 = smul.addr %s345, 8
      %s347 = scalar_lea.vmem %s4, %s346
      %p348 = scmp.lt.s32.totalorder %s23, 1
      %s349 = scalar_select %p348, %s23, 1
      %p350 = scmp.lt.s32.totalorder %s22, 3
      %s351 = scalar_select %p350, %s22, 3
      %p352 = scmp.lt.s32.totalorder %s24, 0
      %s353 = scalar_select %p352, %s24, 0
      %s354 = sadd.s32 %s353, %s351
      %s355 = smul.addr %s349, 4
      %s356 = sadd.s32 %s354, %s355
      %s357 = smul.addr %s356, 8
      %s358 = scalar_lea.vmem %s5, %s357
      %v359 = vld [vmem:[%s317] sm:$0xff]
      %v360 = vld [vmem:[%s322] sm:$0xff]
      %v361 = vld [vmem:[%s322 + $0x8] sm:$0xff]
      %v362 = vld [vmem:[%s322 + $0x10] sm:$0xff]
      %v363 = vld [vmem:[%s322 + $0x18] sm:$0xff]
      %v364 = vld [vmem:[%s325] sm:$0x1]
      %v366 = vlaneseq
      %v367 = vshrl.u32 %v366, 7
      %v368 = vsub.s32 0, %v367
      %v369 = vrot.slane %v364, %v368
      %vm371 = vcmask 261120
      %v373 = vsel %vm371, %v359, 0
      %375 = vmatprep.subr.mxu0 0.0
      %376 = vmatpush1.msra.mxu0 %v360
      %377 = vmatprep.subr.mxu0 0.0
      %378 = vmatpush1.msra.mxu0 %v361
      %379 = vmatprep.subr.mxu0 0.0
      %380 = vmatpush1.msra.mxu0 %v362
      %381 = vmatprep.subr.mxu0 0.0
      %382 = vmatpush1.msra.mxu0 %v363
      %383 = vmatprep.subr.mxu0 0.0
      %384 = vmatpush1.msra.mxu0 0.0
      %385 = vmatprep.subr.mxu0 0.0
      %386 = vmatpush1.msra.mxu0 0.0
      %387 = vmatprep.subr.mxu0 0.0
      %388 = vmatpush1.msra.mxu0 0.0
      %389 = vmatprep.subr.mxu0 0.0
      %390 = vmatpush1.msra.mxu0 0.0
      %391 = vmatprep.subr.mxu0 0.0
      %392 = vmatpush1.msra.mxu0 0.0
      %393 = vmatprep.subr.mxu0 0.0
      %394 = vmatpush1.msra.mxu0 0.0
      %395 = vmatprep.subr.mxu0 0.0
      %396 = vmatpush1.msra.mxu0 0.0
      %397 = vmatprep.subr.mxu0 0.0
      %398 = vmatpush1.msra.mxu0 0.0
      %399 = vmatprep.subr.mxu0 0.0
      %400 = vmatpush1.msra.mxu0 0.0
      %401 = vmatprep.subr.mxu0 0.0
      %402 = vmatpush1.msra.mxu0 0.0
      %403 = vmatprep.subr.mxu0 0.0
      %404 = vmatpush1.msra.mxu0 0.0
      %405 = vmatprep.subr.mxu0 0.0
      %406 = vmatpush1.msra.mxu0 0.0
      %407 = vmatprep.subr.mxu0 0.0
      %408 = vmatpush1.msra.mxu0 0.0
      %409 = vmatprep.subr.mxu0 0.0
      %410 = vmatpush1.msra.mxu0 0.0
      %411 = vmatprep.subr.mxu0 0.0
      %412 = vmatpush1.msra.mxu0 0.0
      %413 = vmatprep.subr.mxu0 0.0
      %414 = vmatpush1.msra.mxu0 0.0
      %415 = vmatprep.subr.mxu0 0.0
      %416 = vmatpush1.msra.mxu0 0.0
      %417 = vmatprep.subr.mxu0 0.0
      %418 = vmatpush1.msra.mxu0 0.0
      %419 = vmatprep.subr.mxu0 0.0
      %420 = vmatpush1.msra.mxu0 0.0
      %421 = vmatprep.subr.mxu0 0.0
      %422 = vmatpush1.msra.mxu0 0.0
      %423 = vmatprep.subr.mxu0 0.0
      %424 = vmatpush1.msra.mxu0 0.0
      %425 = vmatprep.subr.mxu0 0.0
      %426 = vmatpush1.msra.mxu0 0.0
      %427 = vmatprep.subr.mxu0 0.0
      %428 = vmatpush1.msra.mxu0 0.0
      %429 = vmatprep.subr.mxu0 0.0
      %430 = vmatpush1.msra.mxu0 0.0
      %431 = vmatprep.subr.mxu0 0.0
      %432 = vmatpush1.msra.mxu0 0.0
      %433 = vmatprep.subr.mxu0 0.0
      %434 = vmatpush1.msra.mxu0 0.0
      %435 = vmatprep.subr.mxu0 0.0
      %436 = vmatpush1.msra.mxu0 0.0
      %437 = vmatprep.subr.mxu0 0.0
      %438 = vmatpush1.msra.mxu0 0.0
      %439 = vmatprep.mubr.f32.mxu0 0.0
      %440 = vmatmul.mubr.f32.gmra.mrb[0].mxu0 %v373
      %v441 = vpop.f32.mrb[0].mxu0
      %v442 = vadd.f32 %v369, %v441
      %v443 = vpop.f32.mrb[0].mxu0
      %444 = vdwg.mxu0
      %vm445 = vcmask 64512
      %446 = vst.msk [vmem:[%s336] sm:$0xff] %vm445, %v442
      %448 = vrot.lane.b32.xlu0 %v442, 120
      %v449 = vpop.permute.xlu0 %448
      %451 = vst.msk [vmem:[%s347] sm:$0xff] %vm445, %v449
      %452 = vrot.lane.b32.xlu0 %v442, 112
      %v453 = vpop.permute.xlu0 %452
      %455 = vst.msk [vmem:[%s358] sm:$0xff] %vm445, %v453
      %p456 = scmp.lt.s32.totalorder %s23, 1
      %s457 = scalar_select %p456, %s23, 1
      %p458 = scmp.lt.s32.totalorder %s22, 3
      %s459 = scalar_select %p458, %s22, 3
      %p460 = scmp.lt.s32.totalorder %s24, 0
      %s461 = scalar_select %p460, %s24, 0
      %s462 = sadd.s32 %s461, %s459
      %s463 = smul.addr %s457, 4
      %s464 = sadd.s32 %s462, %s463
      %s465 = smul.addr %s464, 8
      %s466 = scalar_lea.vmem %s3, %s465
      %p467 = scmp.lt.s32.totalorder %s23, 1
      %s468 = scalar_select %p467, %s23, 1
      %p469 = scmp.lt.s32.totalorder %s22, 3
      %s470 = scalar_select %p469, %s22, 3
      %p471 = scmp.lt.s32.totalorder %s24, 0
      %s472 = scalar_select %p471, %s24, 0
      %s473 = sadd.s32 %s472, %s470
      %s474 = smul.addr %s468, 4
      %s475 = sadd.s32 %s473, %s474
      %s476 = smul.addr %s475, 8
      %s477 = scalar_lea.vmem %s4, %s476
      %p478 = scmp.lt.s32.totalorder %s23, 1
      %s479 = scalar_select %p478, %s23, 1
      %p480 = scmp.lt.s32.totalorder %s22, 3
      %s481 = scalar_select %p480, %s22, 3
      %p482 = scmp.lt.s32.totalorder %s24, 0
      %s483 = scalar_select %p482, %s24, 0
      %s484 = sadd.s32 %s483, %s481
      %s485 = smul.addr %s479, 4
      %s486 = sadd.s32 %s484, %s485
      %s487 = smul.addr %s486, 8
      %s488 = scalar_lea.vmem %s5, %s487
      // Predicated region
      $region33: #{em_attention_block.2} parent=31 // pred_check
        %p489 = pneg %p138
      $region34: #{em_attention_block.2} parent=31 // pred_check_branch
        %491 = sbr.rel (%p489) target = $region36
      $region35: #{em_attention_block.2} parent=31 // pred_region
        _
      $region36: #{em_attention_block.2} parent=31 // pred_fallthru
        _
      // Predicated region
      $region37: #{em_attention_block.2} parent=31 // pred_check
        %p492 = pneg %p168
      $region38: #{em_attention_block.2} parent=31 // pred_check_branch
        %494 = sbr.rel (%p492) target = $region40
      $region39: #{em_attention_block.2} parent=31 // pred_region
        _
      $region40: #{em_attention_block.2} parent=31 // pred_fallthru
        _
      // Predicated region
      $region41: #{em_attention_block.2} parent=31 // pred_check
        %p495 = pneg %p198
      $region42: #{em_attention_block.2} parent=31 // pred_check_branch
        %497 = sbr.rel (%p495) target = $region44
      $region43: #{em_attention_block.2} parent=31 // pred_region
        _
      $region44: #{em_attention_block.2} parent=31 // pred_fallthru
        _
    $region32: #{em_attention_block.2} parent=5 // pred_fallthru
      _
    %p498 = scmp.le.s32.totalorder 2, %s12
    // Predicated region
    $region45: #{em_attention_block.2} parent=5 // pred_check
      %p499 = pneg %p498
    $region46: #{em_attention_block.2} parent=5 // pred_check_branch
      %501 = sbr.rel (%p499) target = $region48
    $region47: #{em_attention_block.2} parent=5 // pred_region
      %s502 = ssub.s32 %s12, 2
      // Predicated region
      $region49: #{em_attention_block.2} parent=47 // pred_check
        %p503 = pneg %p144
      $region50: #{em_attention_block.2} parent=47 // pred_check_branch
        %505 = sbr.rel (%p503) target = $region52
      $region51: #{em_attention_block.2} parent=47 // pred_region
        %p506 = scmp.lt.s32.totalorder %s26, 1
        %s507 = scalar_select %p506, %s26, 1
        %p508 = scmp.lt.s32.totalorder %s25, 3
        %s509 = scalar_select %p508, %s25, 3
        %p510 = scmp.lt.s32.totalorder %s27, 0
        %s511 = scalar_select %p510, %s27, 0
        %s512 = sadd.s32 %s511, %s509
        %s513 = smul.addr %s507, 4
        %s514 = sadd.s32 %s512, %s513
        %s515 = smul.addr %s514, 8
        %s516 = scalar_lea.vmem %s3, %s515
      $region52: #{em_attention_block.2} parent=47 // pred_fallthru
        _
      // Predicated region
      $region53: #{em_attention_block.2} parent=47 // pred_check
        %p517 = pneg %p174
      $region54: #{em_attention_block.2} parent=47 // pred_check_branch
        %519 = sbr.rel (%p517) target = $region56
      $region55: #{em_attention_block.2} parent=47 // pred_region
        %p520 = scmp.lt.s32.totalorder %s26, 1
        %s521 = scalar_select %p520, %s26, 1
        %p522 = scmp.lt.s32.totalorder %s25, 3
        %s523 = scalar_select %p522, %s25, 3
        %p524 = scmp.lt.s32.totalorder %s27, 0
        %s525 = scalar_select %p524, %s27, 0
        %s526 = sadd.s32 %s525, %s523
        %s527 = smul.addr %s521, 4
        %s528 = sadd.s32 %s526, %s527
        %s529 = smul.addr %s528, 8
        %s530 = scalar_lea.vmem %s4, %s529
      $region56: #{em_attention_block.2} parent=47 // pred_fallthru
        _
      // Predicated region
      $region57: #{em_attention_block.2} parent=47 // pred_check
        %p531 = pneg %p204
      $region58: #{em_attention_block.2} parent=47 // pred_check_branch
        %533 = sbr.rel (%p531) target = $region60
      $region59: #{em_attention_block.2} parent=47 // pred_region
        %p534 = scmp.lt.s32.totalorder %s26, 1
        %s535 = scalar_select %p534, %s26, 1
        %p536 = scmp.lt.s32.totalorder %s25, 3
        %s537 = scalar_select %p536, %s25, 3
        %p538 = scmp.lt.s32.totalorder %s27, 0
        %s539 = scalar_select %p538, %s27, 0
        %s540 = sadd.s32 %s539, %s537
        %s541 = smul.addr %s535, 4
        %s542 = sadd.s32 %s540, %s541
        %s543 = smul.addr %s542, 8
        %s544 = scalar_lea.vmem %s5, %s543
      $region60: #{em_attention_block.2} parent=47 // pred_fallthru
        _
    $region48: #{em_attention_block.2} parent=5 // pred_fallthru
      _
  $region6: #{em_attention_block.2} parent=0 // loop_footer
    %s16 = sadd.s32 1, %s12
  $region7: #{em_attention_block.2} parent=0 // loop_footer_branch
    %11 = sbr.rel target = $region3
  $region8: #{em_attention_block.2} parent=0 // loop_exit
    _

// kernel: em_attention_block.3
$region0: #{em_attention_block.3}
  #allocation0 [shape = 'u32[]', space=smem, size = 0x4, offset = 0x4, fixed_abs, tag = 'smem constant byte address 0x4 - core index']
  #allocation1 [shape = 'u32[144,128]{1,0:T(1,128)}', space=vmem, size = 0x12000, scoped, tag = 'internal scratch']
  #allocation2 [shape = 'f32[8,1]{1,0:T(8,128)}', space=vmem, size = 0x1000, scoped, tag = 'scratch operand']
  #allocation3 [shape = 'f32[8,1]{1,0:T(8,128)}', space=vmem, size = 0x1000, scoped, tag = 'scratch operand']
  #allocation4 [shape = 'f32[8,8]{1,0:T(8,128)}', space=vmem, size = 0x1000, scoped, tag = 'scratch operand']
  #allocation5 [shape = 'f32[8,32]{1,0:T(8,128)}', space=vmem, size = 0x1000, scoped, tag = 'scratch operand']
  %s0 = inlined_call_operand.vmem [shape: f32[2,4,8,8], index: 0, kind: input, shape index: {}]
  %s1 = inlined_call_operand.vmem [shape: f32[2,4,8,8], index: 1, kind: input, shape index: {}]
  %s2 = inlined_call_operand.vmem [shape: f32[2,4,8,8], index: 2, kind: input, shape index: {}]
  %s3 = inlined_call_operand.vmem [shape: f32[4,8,32], index: 3, kind: input, shape index: {}]
  %s4 = inlined_call_operand.vmem [shape: f32[1,32], index: 4, kind: input, shape index: {}]
  %s5 = inlined_call_operand.hbm [shape: f32[2,8,32], index: 5, kind: output, shape index: {}]
  %s6 = sld [smem:[#allocation0]]
  $region69: #{em_attention_block.3} parent=0
    _
  %s8 = ssub.s32 1, %s6
  %s9 = scalar_select 0, %s8, %s6
  $region1: #{em_attention_block.3} parent=0
    #allocation6 [shape = 'u8[8192]{0}', space=vmem, size = 0x2000, scoped, tag = 'output window, operand 0']
    #allocation7 [shape = 's32[2]{0}', space=sflag, size = 0x8, scoped, tag = 'scoped memory for em_attention_block.3']
    %10 = vsyncpa [#allocation7], 0
    %s11 = scalar_lea.sflag [#allocation7], 1
    %12 = vsyncpa %s11, 0
    loop: start=0, step=1, limit=10
    $region2: #{em_attention_block.3} parent=1 // loop_pre_header
      _
    $region3: #{em_attention_block.3} parent=1 // loop_header
      %s14 = sphi 0, %s18
      %p15 = scmp.ge.s32.totalorder %s14, 10
      %s21 = sphi 0, %s47
      %s22 = sphi 0, %s43
      %s23 = sphi 0, %s39
      %s24 = sphi 0, %s35
      %s25 = sphi 0, %s21
      %s26 = sphi 0, %s22
      %s27 = sphi 0, %s23
      %s28 = sphi 0, %s24
      %s29 = sphi 0, %s25
      %s30 = sphi 0, %s26
      %s31 = sphi 0, %s27
      %s32 = sphi 0, %s28
      %s54 = sphi 0, %s56
      %s57 = sphi 0, %s54
      %s58 = sphi 0, %s57
      %s74 = sphi 0, %s58
      %s84 = sphi 0, %s86
      %s87 = sphi 0, %s84
      %s88 = sphi 0, %s87
      %s104 = sphi 0, %s88
      %s114 = sphi 0, %s116
      %s117 = sphi 0, %s114
      %s118 = sphi 0, %s117
      %s134 = sphi 0, %s118
      %s138 = sphi 0, %s138
      %s140 = sphi 0, %s138
      %s141 = sphi 0, %s140
      %s155 = sphi 0, %s141
      %s159 = sphi 0, %s159
      %s161 = sphi 0, %s159
      %s162 = sphi 0, %s161
      %s176 = sphi 0, %s162
      %s184 = sphi 0, %s186
      %s187 = sphi 0, %s184
      %s188 = sphi 0, %s187
      %s204 = sphi 0, %s188
    $region4: #{em_attention_block.3} parent=1 // loop_header_branch
      %17 = sbr.rel (%p15) target = $region8
    $region5: #{em_attention_block.3} parent=1 // loop_body
      %s19 = ssub.s32 %s14, 1
      %s20 = ssub.s32 %s14, 2
      %s33 = sadd.s32 1, %s24
      %p34 = scmp.ge.s32.totalorder %s33, 1
      %s35 = scalar_select %p34, 0, %s33
      %s36 = sadd.s32 1, %s23
      %s37 = scalar_select %p34, %s36, %s23
      %p38 = scmp.ge.s32.totalorder %s37, 4
      %s39 = scalar_select %p38, 0, %s37
      %s40 = sadd.s32 1, %s22
      %s41 = scalar_select %p38, %s40, %s22
      %p42 = scmp.ge.s32.totalorder %s41, 1
      %s43 = scalar_select %p42, 0, %s41
      %s44 = sadd.s32 1, %s21
      %s45 = scalar_select %p42, %s44, %s21
      %p46 = scmp.ge.s32.totalorder %s45, 2
      %s47 = scalar_select %p46, 0, %s45
      %s48 = ssub.s32 %s21, %s47
      %s49 = ssub.s32 %s23, %s39
      %s50 = sor.u32 %s48, %s49
      %s51 = ssub.s32 %s22, %s43
      %s52 = sor.u32 %s50, %s51
      %p53 = scmp.eq.s32.totalorder %s52, 0
      %s55 = sadd.s32 %s54, 1
      %s56 = scalar_select %p53, %s54, %s55
      %p59 = pneg %p53
      %p60 = scmp.eq.s32.totalorder %s14, 7
      %p61 = por %p59, %p60
      %p62 = scmp.ne.s32.totalorder %s54, %s57
      %p63 = scmp.eq.s32.totalorder %s14, 0
      %p64 = por %p62, %p63
      %p65 = scmp.ne.s32.totalorder %s54, %s57
      %p66 = scmp.eq.s32.totalorder %s19, 7
      %p67 = por %p65, %p66
      %p68 = scmp.ne.s32.totalorder %s57, %s58
      %p69 = scmp.eq.s32.totalorder %s19, 0
      %p70 = por %p68, %p69
      %p71 = scmp.ne.s32.totalorder %s57, %s58
      %p72 = scmp.eq.s32.totalorder %s20, 7
      %p73 = por %p71, %p72
      %p75 = scmp.ne.s32.totalorder %s58, %s74
      %p76 = scmp.eq.s32.totalorder %s20, 0
      %p77 = por %p75, %p76
      %s78 = ssub.s32 %s21, %s47
      %s79 = ssub.s32 %s23, %s39
      %s80 = sor.u32 %s78, %s79
      %s81 = ssub.s32 %s24, %s35
      %s82 = sor.u32 %s80, %s81
      %p83 = scmp.eq.s32.totalorder %s82, 0
      %s85 = sadd.s32 %s84, 1
      %s86 = scalar_select %p83, %s84, %s85
      %p89 = pneg %p83
      %p90 = scmp.eq.s32.totalorder %s14, 7
      %p91 = por %p89, %p90
      %p92 = scmp.ne.s32.totalorder %s84, %s87
      %p93 = scmp.eq.s32.totalorder %s14, 0
      %p94 = por %p92, %p93
      %p95 = scmp.ne.s32.totalorder %s84, %s87
      %p96 = scmp.eq.s32.totalorder %s19, 7
      %p97 = por %p95, %p96
      %p98 = scmp.ne.s32.totalorder %s87, %s88
      %p99 = scmp.eq.s32.totalorder %s19, 0
      %p100 = por %p98, %p99
      %p101 = scmp.ne.s32.totalorder %s87, %s88
      %p102 = scmp.eq.s32.totalorder %s20, 7
      %p103 = por %p101, %p102
      %p105 = scmp.ne.s32.totalorder %s88, %s104
      %p106 = scmp.eq.s32.totalorder %s20, 0
      %p107 = por %p105, %p106
      %s108 = ssub.s32 %s21, %s47
      %s109 = ssub.s32 %s23, %s39
      %s110 = sor.u32 %s108, %s109
      %s111 = ssub.s32 %s24, %s35
      %s112 = sor.u32 %s110, %s111
      %p113 = scmp.eq.s32.totalorder %s112, 0
      %s115 = sadd.s32 %s114, 1
      %s116 = scalar_select %p113, %s114, %s115
      %p119 = pneg %p113
      %p120 = scmp.eq.s32.totalorder %s14, 7
      %p121 = por %p119, %p120
      %p122 = scmp.ne.s32.totalorder %s114, %s117
      %p123 = scmp.eq.s32.totalorder %s14, 0
      %p124 = por %p122, %p123
      %p125 = scmp.ne.s32.totalorder %s114, %s117
      %p126 = scmp.eq.s32.totalorder %s19, 7
      %p127 = por %p125, %p126
      %p128 = scmp.ne.s32.totalorder %s117, %s118
      %p129 = scmp.eq.s32.totalorder %s19, 0
      %p130 = por %p128, %p129
      %p131 = scmp.ne.s32.totalorder %s117, %s118
      %p132 = scmp.eq.s32.totalorder %s20, 7
      %p133 = por %p131, %p132
      %p135 = scmp.ne.s32.totalorder %s118, %s134
      %p136 = scmp.eq.s32.totalorder %s20, 0
      %p137 = por %p135, %p136
      %s139 = sadd.s32 %s138, 1
      %p142 = scmp.eq.s32.totalorder %s14, 7
      %p143 = scmp.ne.s32.totalorder %s138, %s140
      %p144 = scmp.eq.s32.totalorder %s14, 0
      %p145 = por %p143, %p144
      %p146 = scmp.ne.s32.totalorder %s138, %s140
      %p147 = scmp.eq.s32.totalorder %s19, 7
      %p148 = por %p146, %p147
      %p149 = scmp.ne.s32.totalorder %s140, %s141
      %p150 = scmp.eq.s32.totalorder %s19, 0
      %p151 = por %p149, %p150
      %p152 = scmp.ne.s32.totalorder %s140, %s141
      %p153 = scmp.eq.s32.totalorder %s20, 7
      %p154 = por %p152, %p153
      %p156 = scmp.ne.s32.totalorder %s141, %s155
      %p157 = scmp.eq.s32.totalorder %s20, 0
      %p158 = por %p156, %p157
      %s160 = sadd.s32 %s159, 1
      %p163 = scmp.eq.s32.totalorder %s14, 7
      %p164 = scmp.ne.s32.totalorder %s159, %s161
      %p165 = scmp.eq.s32.totalorder %s14, 0
      %p166 = por %p164, %p165
      %p167 = scmp.ne.s32.totalorder %s159, %s161
      %p168 = scmp.eq.s32.totalorder %s19, 7
      %p169 = por %p167, %p168
      %p170 = scmp.ne.s32.totalorder %s161, %s162
      %p171 = scmp.eq.s32.totalorder %s19, 0
      %p172 = por %p170, %p171
      %p173 = scmp.ne.s32.totalorder %s161, %s162
      %p174 = scmp.eq.s32.totalorder %s20, 7
      %p175 = por %p173, %p174
      %p177 = scmp.ne.s32.totalorder %s162, %s176
      %p178 = scmp.eq.s32.totalorder %s20, 0
      %p179 = por %p177, %p178
      %s180 = ssub.s32 %s21, %s47
      %s181 = ssub.s32 %s22, %s43
      %s182 = sor.u32 %s180, %s181
      %p183 = scmp.eq.s32.totalorder %s182, 0
      %s185 = sadd.s32 %s184, 1
      %s186 = scalar_select %p183, %s184, %s185
      %p189 = pneg %p183
      %p190 = scmp.eq.s32.totalorder %s14, 7
      %p191 = por %p189, %p190
      %p192 = scmp.ne.s32.totalorder %s184, %s187
      %p193 = scmp.eq.s32.totalorder %s14, 0
      %p194 = por %p192, %p193
      %p195 = scmp.ne.s32.totalorder %s184, %s187
      %p196 = scmp.eq.s32.totalorder %s19, 7
      %p197 = por %p195, %p196
      %p198 = scmp.ne.s32.totalorder %s187, %s188
      %p199 = scmp.eq.s32.totalorder %s19, 0
      %p200 = por %p198, %p199
      %p201 = scmp.ne.s32.totalorder %s187, %s188
      %p202 = scmp.eq.s32.totalorder %s20, 7
      %p203 = por %p201, %p202
      %p205 = scmp.ne.s32.totalorder %s188, %s204
      %p206 = scmp.eq.s32.totalorder %s20, 0
      %p207 = por %p205, %p206
      %p208 = scmp.le.s32.totalorder 1, %s14
      %p209 = scmp.lt.s32.totalorder %s14, 9
      %p210 = pnand %p208, %p209
      %p211 = pneg %p210
      // Predicated region
      $region9: #{em_attention_block.3} parent=5 // pred_check
        _
      $region10: #{em_attention_block.3} parent=5 // pred_check_branch
        %213 = sbr.rel (%p210) target = $region12
      $region11: #{em_attention_block.3} parent=5 // pred_region
        %s214 = ssub.s32 %s14, 1
        // Predicated region
        $region13: #{em_attention_block.3} parent=11 // pred_check
          %p215 = pneg %p151
        $region14: #{em_attention_block.3} parent=11 // pred_check_branch
          %217 = sbr.rel (%p215) target = $region16
        $region15: #{em_attention_block.3} parent=11 // pred_region
          _
        $region16: #{em_attention_block.3} parent=11 // pred_fallthru
          _
        // Predicated region
        $region17: #{em_attention_block.3} parent=11 // pred_check
          %p218 = pneg %p172
        $region18: #{em_attention_block.3} parent=11 // pred_check_branch
          %220 = sbr.rel (%p218) target = $region20
        $region19: #{em_attention_block.3} parent=11 // pred_region
          _
        $region20: #{em_attention_block.3} parent=11 // pred_fallthru
          _
      $region12: #{em_attention_block.3} parent=5 // pred_fallthru
        _
      %p221 = scmp.lt.s32.totalorder %s14, 8
      // Predicated region
      $region21: #{em_attention_block.3} parent=5 // pred_check
        %p222 = pneg %p221
      $region22: #{em_attention_block.3} parent=5 // pred_check_branch
        %224 = sbr.rel (%p222) target = $region24
      $region23: #{em_attention_block.3} parent=5 // pred_region
        // Predicated region
        $region25: #{em_attention_block.3} parent=23 // pred_check
          %p225 = pneg %p64
        $region26: #{em_attention_block.3} parent=23 // pred_check_branch
          %227 = sbr.rel (%p225) target = $region28
        $region27: #{em_attention_block.3} parent=23 // pred_region
          %p228 = scmp.lt.s32.totalorder %s21, 1
          %s229 = scalar_select %p228, %s21, 1
          %p230 = scmp.lt.s32.totalorder %s23, 3
          %s231 = scalar_select %p230, %s23, 3
          %p232 = scmp.lt.s32.totalorder %s22, 0
          %s233 = scalar_select %p232, %s22, 0
          %s234 = sadd.s32 %s233, %s231
          %s235 = smul.addr %s229, 4
          %s236 = sadd.s32 %s234, %s235
          %s237 = smul.addr %s236, 8
          %s238 = scalar_lea.vmem %s0, %s237
        $region28: #{em_attention_block.3} parent=23 // pred_fallthru
          _
        // Predicated region
        $region29: #{em_attention_block.3} parent=23 // pred_check
          %p239 = pneg %p94
        $region30: #{em_attention_block.3} parent=23 // pred_check_branch
          %241 = sbr.rel (%p239) target = $region32
        $region31: #{em_attention_block.3} parent=23 // pred_region
          %p242 = scmp.lt.s32.totalorder %s21, 1
          %s243 = scalar_select %p242, %s21, 1
          %p244 = scmp.lt.s32.totalorder %s23, 3
          %s245 = scalar_select %p244, %s23, 3
          %p246 = scmp.lt.s32.totalorder %s24, 0
          %s247 = scalar_select %p246, %s24, 0
          %s248 = sadd.s32 %s247, %s245
          %s249 = smul.addr %s243, 4
          %s250 = sadd.s32 %s248, %s249
          %s251 = smul.addr %s250, 8
          %s252 = scalar_lea.vmem %s1, %s251
        $region32: #{em_attention_block.3} parent=23 // pred_fallthru
          _
        // Predicated region
        $region33: #{em_attention_block.3} parent=23 // pred_check
          %p253 = pneg %p124
        $region34: #{em_attention_block.3} parent=23 // pred_check_branch
          %255 = sbr.rel (%p253) target = $region36
        $region35: #{em_attention_block.3} parent=23 // pred_region
          %p256 = scmp.lt.s32.totalorder %s21, 1
          %s257 = scalar_select %p256, %s21, 1
          %p258 = scmp.lt.s32.totalorder %s23, 3
          %s259 = scalar_select %p258, %s23, 3
          %p260 = scmp.lt.s32.totalorder %s24, 0
          %s261 = scalar_select %p260, %s24, 0
          %s262 = sadd.s32 %s261, %s259
          %s263 = smul.addr %s257, 4
          %s264 = sadd.s32 %s262, %s263
          %s265 = smul.addr %s264, 8
          %s266 = scalar_lea.vmem %s2, %s265
        $region36: #{em_attention_block.3} parent=23 // pred_fallthru
          _
      $region24: #{em_attention_block.3} parent=5 // pred_fallthru
        _
      %p267 = scmp.le.s32.totalorder 1, %s14
      %p268 = scmp.lt.s32.totalorder %s14, 9
      %p269 = pnand %p267, %p268
      %p270 = pneg %p269
      // Predicated region
      $region37: #{em_attention_block.3} parent=5 // pred_check
        _
      $region38: #{em_attention_block.3} parent=5 // pred_check_branch
        %272 = sbr.rel (%p269) target = $region40
      $region39: #{em_attention_block.3} parent=5 // pred_region
        %s273 = ssub.s32 %s14, 1
        %p274 = scmp.lt.s32.totalorder %s25, 1
        %s275 = scalar_select %p274, %s25, 1
        %p276 = scmp.lt.s32.totalorder %s27, 3
        %s277 = scalar_select %p276, %s27, 3
        %p278 = scmp.lt.s32.totalorder %s26, 0
        %s279 = scalar_select %p278, %s26, 0
        %s280 = sadd.s32 %s279, %s277
        %s281 = smul.addr %s275, 4
        %s282 = sadd.s32 %s280, %s281
        %s283 = smul.addr %s282, 8
        %s284 = scalar_lea.vmem %s0, %s283
        %p285 = pneg %p70
        %p286 = pneg %p67
        %p287 = scmp.lt.s32.totalorder %s25, 1
        %s288 = scalar_select %p287, %s25, 1
        %p289 = scmp.lt.s32.totalorder %s27, 3
        %s290 = scalar_select %p289, %s27, 3
        %p291 = scmp.lt.s32.totalorder %s28, 0
        %s292 = scalar_select %p291, %s28, 0
        %s293 = sadd.s32 %s292, %s290
        %s294 = smul.addr %s288, 4
        %s295 = sadd.s32 %s293, %s294
        %s296 = smul.addr %s295, 8
        %s297 = scalar_lea.vmem %s1, %s296
        %p298 = pneg %p100
        %p299 = pneg %p97
        %p300 = scmp.lt.s32.totalorder %s25, 1
        %s301 = scalar_select %p300, %s25, 1
        %p302 = scmp.lt.s32.totalorder %s27, 3
        %s303 = scalar_select %p302, %s27, 3
        %p304 = scmp.lt.s32.totalorder %s28, 0
        %s305 = scalar_select %p304, %s28, 0
        %s306 = sadd.s32 %s305, %s303
        %s307 = smul.addr %s301, 4
        %s308 = sadd.s32 %s306, %s307
        %s309 = smul.addr %s308, 8
        %s310 = scalar_lea.vmem %s2, %s309
        %p311 = pneg %p130
        %p312 = pneg %p127
        %p313 = pneg %p151
        %p314 = pneg %p148
        %p315 = pneg %p172
        %p316 = pneg %p169
        %p317 = pneg %p200
        %p318 = pneg %p197
        %s319 = sand.u32 %s187, 1
        %s320 = scalar_lea.sflag [#allocation7], %s319
        %s321 = sand.u32 %s187, 1
        %s322 = smul.addr %s321, 8
        %s323 = scalar_lea.vmem [#allocation6], %s322
        %p324 = scmp.lt.s32.totalorder %s25, 1
        %s325 = scalar_select %p324, %s25, 1
        %p326 = scmp.lt.s32.totalorder %s27, 3
        %s327 = scalar_select %p326, %s27, 3
        %p328 = scmp.lt.s32.totalorder %s26, 0
        %s329 = scalar_select %p328, %s26, 0
        %s330 = sadd.s32 %s329, %s327
        %s331 = smul.addr %s325, 4
        %s332 = sadd.s32 %s330, %s331
        %s333 = smul.addr %s332, 8
        %s334 = scalar_lea.vmem %s0, %s333
        %p335 = scmp.lt.s32.totalorder %s25, 1
        %s336 = scalar_select %p335, %s25, 1
        %p337 = scmp.lt.s32.totalorder %s27, 3
        %s338 = scalar_select %p337, %s27, 3
        %p339 = scmp.lt.s32.totalorder %s28, 0
        %s340 = scalar_select %p339, %s28, 0
        %s341 = sadd.s32 %s340, %s338
        %s342 = smul.addr %s336, 4
        %s343 = sadd.s32 %s341, %s342
        %s344 = smul.addr %s343, 8
        %s345 = scalar_lea.vmem %s1, %s344
        %p346 = scmp.lt.s32.totalorder %s25, 1
        %s347 = scalar_select %p346, %s25, 1
        %p348 = scmp.lt.s32.totalorder %s27, 3
        %s349 = scalar_select %p348, %s27, 3
        %p350 = scmp.lt.s32.totalorder %s28, 0
        %s351 = scalar_select %p350, %s28, 0
        %s352 = sadd.s32 %s351, %s349
        %s353 = smul.addr %s347, 4
        %s354 = sadd.s32 %s352, %s353
        %s355 = smul.addr %s354, 8
        %s356 = scalar_lea.vmem %s2, %s355
        %p357 = scmp.eq.s32.totalorder %s27, 0
        %p358 = scmp.eq.s32.totalorder %s28, 0
        %p359 = pnand %p357, %p358
        %p360 = pneg %p359
        // Predicated region
        $region41: #{em_attention_block.3} parent=39 // pred_check
          _
        $region42: #{em_attention_block.3} parent=39 // pred_check_branch
          %362 = sbr.rel (%p359) target = $region44
        $region43: #{em_attention_block.3} parent=39 // pred_region
          %vm363 = vcmask 261120
          %364 = vst.msk [vmem:[#allocation5] sm:$0xff] %vm363, 0.0
        $region44: #{em_attention_block.3} parent=39 // pred_fallthru
          _
        // Predicated region
        $region45: #{em_attention_block.3} parent=39 // pred_check
          %p365 = pneg %p358
        $region46: #{em_attention_block.3} parent=39 // pred_check_branch
          %367 = sbr.rel (%p365) target = $region48
        $region47: #{em_attention_block.3} parent=39 // pred_region
          %vm368 = vcmask 7168
          %369 = vst.msk [vmem:[#allocation2] sm:$0xff] %vm368, -inf
          %370 = vst.msk [vmem:[#allocation3] sm:$0xff] %vm368, 0.0
          %vm371 = vcmask 64512
          %372 = vst.msk [vmem:[#allocation4] sm:$0xff] %vm371, 0.0
        $region48: #{em_attention_block.3} parent=39 // pred_fallthru
          _
        %v373 = vld [vmem:[%s334] sm:$0xff]
        %v374 = vld [vmem:[%s345] sm:$0xff]
        %v375 = vld [vmem:[%s356] sm:$0xff]
        %vm376 = vcmask 64512
        %v378 = vsel %vm376, %v373, 0
        %v381 = vsel %vm376, %v374, 0
        %383 = vmatprep.subr.mxu0 0.0
        %384 = vmatpush1.xpose.msra.mxu0 %v381
        %385 = vmatprep.subr.mxu0 0.0
        %386 = vmatpush1.xpose.msra.mxu0 0.0
        %387 = vmatprep.subr.mxu0 0.0
        %388 = vmatpush1.xpose.msra.mxu0 0.0
        %389 = vmatprep.subr.mxu0 0.0
        %390 = vmatpush1.xpose.msra.mxu0 0.0
        %391 = vmatprep.subr.mxu0 0.0
        %392 = vmatpush1.xpose.msra.mxu0 0.0
        %393 = vmatprep.subr.mxu0 0.0
        %394 = vmatpush1.xpose.msra.mxu0 0.0
        %395 = vmatprep.subr.mxu0 0.0
        %396 = vmatpush1.xpose.msra.mxu0 0.0
        %397 = vmatprep.subr.mxu0 0.0
        %398 = vmatpush1.xpose.msra.mxu0 0.0
        %399 = vmatprep.subr.mxu0 0.0
        %400 = vmatpush1.xpose.msra.mxu0 0.0
        %401 = vmatprep.subr.mxu0 0.0
        %402 = vmatpush1.xpose.msra.mxu0 0.0
        %403 = vmatprep.subr.mxu0 0.0
        %404 = vmatpush1.xpose.msra.mxu0 0.0
        %405 = vmatprep.subr.mxu0 0.0
        %406 = vmatpush1.xpose.msra.mxu0 0.0
        %407 = vmatprep.subr.mxu0 0.0
        %408 = vmatpush1.xpose.msra.mxu0 0.0
        %409 = vmatprep.subr.mxu0 0.0
        %410 = vmatpush1.xpose.msra.mxu0 0.0
        %411 = vmatprep.subr.mxu0 0.0
        %412 = vmatpush1.xpose.msra.mxu0 0.0
        %413 = vmatprep.subr.mxu0 0.0
        %414 = vmatpush1.xpose.msra.mxu0 0.0
        %415 = vmatprep.subr.mxu0 0.0
        %416 = vmatpush1.xpose.msra.mxu0 0.0
        %417 = vmatprep.subr.mxu0 0.0
        %418 = vmatpush1.xpose.msra.mxu0 0.0
        %419 = vmatprep.subr.mxu0 0.0
        %420 = vmatpush1.xpose.msra.mxu0 0.0
        %421 = vmatprep.subr.mxu0 0.0
        %422 = vmatpush1.xpose.msra.mxu0 0.0
        %423 = vmatprep.subr.mxu0 0.0
        %424 = vmatpush1.xpose.msra.mxu0 0.0
        %425 = vmatprep.subr.mxu0 0.0
        %426 = vmatpush1.xpose.msra.mxu0 0.0
        %427 = vmatprep.subr.mxu0 0.0
        %428 = vmatpush1.xpose.msra.mxu0 0.0
        %429 = vmatprep.subr.mxu0 0.0
        %430 = vmatpush1.xpose.msra.mxu0 0.0
        %431 = vmatprep.subr.mxu0 0.0
        %432 = vmatpush1.xpose.msra.mxu0 0.0
        %433 = vmatprep.subr.mxu0 0.0
        %434 = vmatpush1.xpose.msra.mxu0 0.0
        %435 = vmatprep.subr.mxu0 0.0
        %436 = vmatpush1.xpose.msra.mxu0 0.0
        %437 = vmatprep.subr.mxu0 0.0
        %438 = vmatpush1.xpose.msra.mxu0 0.0
        %439 = vmatprep.subr.mxu0 0.0
        %440 = vmatpush1.xpose.msra.mxu0 0.0
        %441 = vmatprep.subr.mxu0 0.0
        %442 = vmatpush1.xpose.msra.mxu0 0.0
        %443 = vmatprep.subr.mxu0 0.0
        %444 = vmatpush1.xpose.msra.mxu0 0.0
        %445 = vmatprep.subr.mxu0 0.0
        %446 = vmatpush1.xpose.msra.mxu0 0.0
        %447 = vmatprep.mubr.f32.mxu0 0.0
        %448 = vmatmul.mubr.f32.gmra.mrb[0].mxu0 %v378
        %v449 = vpop.f32.mrb[0].mxu0
        %v450 = vadd.f32 0.0, %v449
        %v451 = vpop.f32.mrb[0].mxu0
        %452 = vdwg.mxu0
        %v453 = vld [vmem:[#allocation2] sm:$0xff]
        %v454 = vsel %vm376, %v450, -inf
        %455 = vmax.xlane.f32.xlu0 %v454
        %v456 = vpop.xlane.xlu0 %455
        %v457 = vmax.f32 %v453, %v456
        %v458 = vsub.f32 %v453, %v457
        %v459 = vmul.f32 %v458, 1.442695
        %v460 = vpow.pop %v459
        %462 = vset.pattern.permute.xlu0 0
        %463 = vperm.xlu0 %462, %v457
        %v464 = vpop.permute.xlu0 %463
        %v466 = vsub.f32 %v450, %v464
        %v467 = vmul.f32 %v466, 1.442695
        %v468 = vpow.pop %v467
        %v469 = vld [vmem:[#allocation3] sm:$0xff]
        %v470 = vmul.f32 %v460, %v469
        %v471 = vsel %vm376, %v468, 0.0
        %472 = vadd.xlane.f32.xlu0 %v471
        %v473 = vpop.xlane.xlu0 %472
        %v474 = vadd.f32 %v470, %v473
        %vm475 = vcmask 7168
        %476 = vst.msk [vmem:[#allocation3] sm:$0xff] %vm475, %v474
        %v477 = vld [vmem:[#allocation4] sm:$0xff]
        %479 = vset.pattern.permute.xlu0 0
        %480 = vperm.xlu0 %479, %v460
        %v481 = vpop.permute.xlu0 %480
        %v483 = vmul.f32 %v481, %v477
        %v485 = vsel %vm376, %v468, 0
        %487 = vmatprep.subr.mxu0 0.0
        %488 = vmatpush1.msra.mxu0 %v375
        %489 = vmatprep.subr.mxu0 0.0
        %490 = vmatpush1.msra.mxu0 0.0
        %491 = vmatprep.subr.mxu0 0.0
        %492 = vmatpush1.msra.mxu0 0.0
        %493 = vmatprep.subr.mxu0 0.0
        %494 = vmatpush1.msra.mxu0 0.0
        %495 = vmatprep.subr.mxu0 0.0
        %496 = vmatpush1.msra.mxu0 0.0
        %497 = vmatprep.subr.mxu0 0.0
        %498 = vmatpush1.msra.mxu0 0.0
        %499 = vmatprep.subr.mxu0 0.0
        %500 = vmatpush1.msra.mxu0 0.0
        %501 = vmatprep.subr.mxu0 0.0
        %502 = vmatpush1.msra.mxu0 0.0
        %503 = vmatprep.subr.mxu0 0.0
        %504 = vmatpush1.msra.mxu0 0.0
        %505 = vmatprep.subr.mxu0 0.0
        %506 = vmatpush1.msra.mxu0 0.0
        %507 = vmatprep.subr.mxu0 0.0
        %508 = vmatpush1.msra.mxu0 0.0
        %509 = vmatprep.subr.mxu0 0.0
        %510 = vmatpush1.msra.mxu0 0.0
        %511 = vmatprep.subr.mxu0 0.0
        %512 = vmatpush1.msra.mxu0 0.0
        %513 = vmatprep.subr.mxu0 0.0
        %514 = vmatpush1.msra.mxu0 0.0
        %515 = vmatprep.subr.mxu0 0.0
        %516 = vmatpush1.msra.mxu0 0.0
        %517 = vmatprep.subr.mxu0 0.0
        %518 = vmatpush1.msra.mxu0 0.0
        %519 = vmatprep.subr.mxu0 0.0
        %520 = vmatpush1.msra.mxu0 0.0
        %521 = vmatprep.subr.mxu0 0.0
        %522 = vmatpush1.msra.mxu0 0.0
        %523 = vmatprep.subr.mxu0 0.0
        %524 = vmatpush1.msra.mxu0 0.0
        %525 = vmatprep.subr.mxu0 0.0
        %526 = vmatpush1.msra.mxu0 0.0
        %527 = vmatprep.subr.mxu0 0.0
        %528 = vmatpush1.msra.mxu0 0.0
        %529 = vmatprep.subr.mxu0 0.0
        %530 = vmatpush1.msra.mxu0 0.0
        %531 = vmatprep.subr.mxu0 0.0
        %532 = vmatpush1.msra.mxu0 0.0
        %533 = vmatprep.subr.mxu0 0.0
        %534 = vmatpush1.msra.mxu0 0.0
        %535 = vmatprep.subr.mxu0 0.0
        %536 = vmatpush1.msra.mxu0 0.0
        %537 = vmatprep.subr.mxu0 0.0
        %538 = vmatpush1.msra.mxu0 0.0
        %539 = vmatprep.subr.mxu0 0.0
        %540 = vmatpush1.msra.mxu0 0.0
        %541 = vmatprep.subr.mxu0 0.0
        %542 = vmatpush1.msra.mxu0 0.0
        %543 = vmatprep.subr.mxu0 0.0
        %544 = vmatpush1.msra.mxu0 0.0
        %545 = vmatprep.subr.mxu0 0.0
        %546 = vmatpush1.msra.mxu0 0.0
        %547 = vmatprep.subr.mxu0 0.0
        %548 = vmatpush1.msra.mxu0 0.0
        %549 = vmatprep.subr.mxu0 0.0
        %550 = vmatpush1.msra.mxu0 0.0
        %551 = vmatprep.mubr.f32.mxu0 0.0
        %552 = vmatmul.mubr.f32.gmra.mrb[0].mxu0 %v485
        %v553 = vpop.f32.mrb[0].mxu0
        %v554 = vadd.f32 0.0, %v553
        %v555 = vpop.f32.mrb[0].mxu0
        %556 = vdwg.mxu0
        %v557 = vadd.f32 %v483, %v554
        %558 = vst.msk [vmem:[#allocation4] sm:$0xff] %vm376, %v557
        %559 = vst.msk [vmem:[#allocation2] sm:$0xff] %vm475, %v457
        // Predicated region
        $region49: #{em_attention_block.3} parent=39 // pred_check
          %p560 = pneg %p358
        $region50: #{em_attention_block.3} parent=39 // pred_check_branch
          %562 = sbr.rel (%p560) target = $region52
        $region51: #{em_attention_block.3} parent=39 // pred_region
          %v563 = vld [vmem:[#allocation4] sm:$0xff]
          %v564 = vld [vmem:[#allocation3] sm:$0xff]
          %v565 = vrcp.pop %v564
          %567 = vset.pattern.permute.xlu0 0
          %568 = vperm.xlu0 %567, %v565
          %v569 = vpop.permute.xlu0 %568
          %v571 = vmul.f32 %v563, %v569
          %s572 = smul.u32 %s27, 8
          %s573 = scalar_lea.vmem %s3, %s572
          %v574 = vld [vmem:[%s573] sm:$0xff]
          %v575 = vld [vmem:[#allocation5] sm:$0xff]
          %v577 = vsel %vm376, %v571, 0
          %579 = vmatprep.subr.mxu0 0.0
          %580 = vmatpush1.msra.mxu0 %v574
          %581 = vmatprep.subr.mxu0 0.0
          %582 = vmatpush1.msra.mxu0 0.0
          %583 = vmatprep.subr.mxu0 0.0
          %584 = vmatpush1.msra.mxu0 0.0
          %585 = vmatprep.subr.mxu0 0.0
          %586 = vmatpush1.msra.mxu0 0.0
          %587 = vmatprep.subr.mxu0 0.0
          %588 = vmatpush1.msra.mxu0 0.0
          %589 = vmatprep.subr.mxu0 0.0
          %590 = vmatpush1.msra.mxu0 0.0
          %591 = vmatprep.subr.mxu0 0.0
          %592 = vmatpush1.msra.mxu0 0.0
          %593 = vmatprep.subr.mxu0 0.0
          %594 = vmatpush1.msra.mxu0 0.0
          %595 = vmatprep.subr.mxu0 0.0
          %596 = vmatpush1.msra.mxu0 0.0
          %597 = vmatprep.subr.mxu0 0.0
          %598 = vmatpush1.msra.mxu0 0.0
          %599 = vmatprep.subr.mxu0 0.0
          %600 = vmatpush1.msra.mxu0 0.0
          %601 = vmatprep.subr.mxu0 0.0
          %602 = vmatpush1.msra.mxu0 0.0
          %603 = vmatprep.subr.mxu0 0.0
          %604 = vmatpush1.msra.mxu0 0.0
          %605 = vmatprep.subr.mxu0 0.0
          %606 = vmatpush1.msra.mxu0 0.0
          %607 = vmatprep.subr.mxu0 0.0
          %608 = vmatpush1.msra.mxu0 0.0
          %609 = vmatprep.subr.mxu0 0.0
          %610 = vmatpush1.msra.mxu0 0.0
          %611 = vmatprep.subr.mxu0 0.0
          %612 = vmatpush1.msra.mxu0 0.0
          %613 = vmatprep.subr.mxu0 0.0
          %614 = vmatpush1.msra.mxu0 0.0
          %615 = vmatprep.subr.mxu0 0.0
          %616 = vmatpush1.msra.mxu0 0.0
          %617 = vmatprep.subr.mxu0 0.0
          %618 = vmatpush1.msra.mxu0 0.0
          %619 = vmatprep.subr.mxu0 0.0
          %620 = vmatpush1.msra.mxu0 0.0
          %621 = vmatprep.subr.mxu0 0.0
          %622 = vmatpush1.msra.mxu0 0.0
          %623 = vmatprep.subr.mxu0 0.0
          %624 = vmatpush1.msra.mxu0 0.0
          %625 = vmatprep.subr.mxu0 0.0
          %626 = vmatpush1.msra.mxu0 0.0
          %627 = vmatprep.subr.mxu0 0.0
          %628 = vmatpush1.msra.mxu0 0.0
          %629 = vmatprep.subr.mxu0 0.0
          %630 = vmatpush1.msra.mxu0 0.0
          %631 = vmatprep.subr.mxu0 0.0
          %632 = vmatpush1.msra.mxu0 0.0
          %633 = vmatprep.subr.mxu0 0.0
          %634 = vmatpush1.msra.mxu0 0.0
          %635 = vmatprep.subr.mxu0 0.0
          %636 = vmatpush1.msra.mxu0 0.0
          %637 = vmatprep.subr.mxu0 0.0
          %638 = vmatpush1.msra.mxu0 0.0
          %639 = vmatprep.subr.mxu0 0.0
          %640 = vmatpush1.msra.mxu0 0.0
          %641 = vmatprep.subr.mxu0 0.0
          %642 = vmatpush1.msra.mxu0 0.0
          %643 = vmatprep.mubr.f32.mxu0 0.0
          %644 = vmatmul.mubr.f32.gmra.mrb[0].mxu0 %v577
          %v645 = vpop.f32.mrb[0].mxu0
          %v646 = vadd.f32 0.0, %v645
          %v647 = vpop.f32.mrb[0].mxu0
          %648 = vdwg.mxu0
          %v649 = vadd.f32 %v575, %v646
          %vm650 = vcmask 261120
          %651 = vst.msk [vmem:[#allocation5] sm:$0xff] %vm650, %v649
        $region52: #{em_attention_block.3} parent=39 // pred_fallthru
          _
        %p652 = scmp.eq.s32.totalorder %s27, 3
        %p653 = pnand %p652, %p358
        %p654 = pneg %p653
        // Predicated region
        $region53: #{em_attention_block.3} parent=39 // pred_check
          _
        $region54: #{em_attention_block.3} parent=39 // pred_check_branch
          %656 = sbr.rel (%p653) target = $region56
        $region55: #{em_attention_block.3} parent=39 // pred_region
          %v657 = vld [vmem:[#allocation5] sm:$0xff]
          %v658 = vld [vmem:[%s4] sm:$0x1]
          %v660 = vlaneseq
          %v661 = vshrl.u32 %v660, 7
          %v662 = vsub.s32 0, %v661
          %v663 = vrot.slane %v658, %v662
          %v665 = vadd.f32 %v657, %v663
          %vm666 = vcmask 261120
          %667 = vst.msk [vmem:[%s323] sm:$0xff] %vm666, %v665
        $region56: #{em_attention_block.3} parent=39 // pred_fallthru
          _
        %s668 = sand.u32 %s187, 1
        %s669 = scalar_lea.sflag [#allocation7], %s668
        %s670 = sand.u32 %s187, 1
        %s671 = smul.addr %s670, 8
        %s672 = scalar_lea.vmem [#allocation6], %s671
        // Predicated region
        $region57: #{em_attention_block.3} parent=39 // pred_check
          %p673 = pneg %p197
        $region58: #{em_attention_block.3} parent=39 // pred_check_branch
          %675 = sbr.rel (%p673) target = $region60
        $region59: #{em_attention_block.3} parent=39 // pred_region
          %s677 = ssub.s32 128, 128
          %678 = vsyncadd %s669, %s677
          %s679 = sadd.s32 %s26, %s25
          %s680 = smul.addr %s679, 128
          %s681 = scalar_lea.hbm %s5, %s680
          %s683 = sshll.u32 %s672, 4
          %s684 = int_to_ptr.vmem [resolvable:$true] %s683
          %686 = dma.vmem_to_hbm [thread:$0]  %s684, 128, %s681, %s669
        $region60: #{em_attention_block.3} parent=39 // pred_fallthru
          _
      $region40: #{em_attention_block.3} parent=5 // pred_fallthru
        _
      %p687 = scmp.le.s32.totalorder 2, %s14
      // Predicated region
      $region61: #{em_attention_block.3} parent=5 // pred_check
        %p688 = pneg %p687
      $region62: #{em_attention_block.3} parent=5 // pred_check_branch
        %690 = sbr.rel (%p688) target = $region64
      $region63: #{em_attention_block.3} parent=5 // pred_region
        %s691 = ssub.s32 %s14, 2
        // Predicated region
        $region65: #{em_attention_block.3} parent=63 // pred_check
          %p692 = pneg %p203
        $region66: #{em_attention_block.3} parent=63 // pred_check_branch
          %694 = sbr.rel (%p692) target = $region68
        $region67: #{em_attention_block.3} parent=63 // pred_region
          %s695 = sand.u32 %s188, 1
          %s696 = scalar_lea.sflag [#allocation7], %s695
          %s697 = sand.u32 %s188, 1
          %s698 = smul.addr %s697, 8
          %s699 = scalar_lea.vmem [#allocation6], %s698
          %700 = dma.done %s696, 128
        $region68: #{em_attention_block.3} parent=63 // pred_fallthru
          _
      $region64: #{em_attention_block.3} parent=5 // pred_fallthru
        _
    $region6: #{em_attention_block.3} parent=1 // loop_footer
      %s18 = sadd.s32 1, %s14
    $region7: #{em_attention_block.3} parent=1 // loop_footer_branch
      %13 = sbr.rel target = $region3
    $region8: #{em_attention_block.3} parent=1 // loop_exit
      _
    %701 = vsyncpa [#allocation7], 1
    %s702 = scalar_lea.sflag [#allocation7], 1
    %703 = vsyncpa %s702, 1

</llo_original>
